<compile_context>
chip_gen: v5e
topology: v5e:2x2
jax: 0.10.0
libtpu: 0.0.40
codegen_flags: <defaults>
</compile_context>

<pallas_src>
import numpy as np
import jax
import jax.numpy as jnp
from jax.experimental import pallas as pl
from jax.experimental.pallas import tpu as pltpu

# ---------------- synthetic SMPL configuration (small shapes) ----------------
NUM_BODY_JOINTS = 23
NUM_JOINTS = NUM_BODY_JOINTS + 1          # 24 (global orient + body joints)
NUM_BETAS = 10
NUM_VERTS = 256                           # synthetic vertex count (real SMPL: 6890)
NUM_POSE_BASIS = NUM_BODY_JOINTS * 9      # 207
BATCH = 2
MAX_LANE_TILE = 4096                      # cap (keeps streamed posedirs tiles within
                                          # v7x's smaller VMEM at real SMPL sizes)

# Real SMPL kinematic tree (24 joints), deterministic.
PARENTS = np.array([-1, 0, 0, 0, 1, 2, 3, 4, 5, 6, 7, 8, 9, 9, 9,
                    12, 13, 14, 16, 17, 18, 19, 20, 21], dtype=np.int64)
# Synthetic stand-in for VertexJointSelector's 21 extra vertex ids (face/feet/fingertips).
EXTRA_JOINT_IDS = np.array([(i * 11) % NUM_VERTS for i in range(21)], dtype=np.int32)

_PAR = pltpu.CompilerParams(dimension_semantics=("parallel",))


def _pick_tile(n, max_tile=MAX_LANE_TILE):
    """Largest lane tile <= max_tile that exactly divides n (multiple of 128 if tiled)."""
    if n <= max_tile:
        return n
    for t in range(max_tile - max_tile % 128, 0, -128):
        if n % t == 0:
            return t
    # TODO(synk): real SMPL (3V = 20670) needs padding / cdiv + masking of the vertex axis.
    raise ValueError(f"no suitable lane tile for n={n}")


# =============================== Pallas kernels ===============================

def _blend_kernel(betas_ref, pf_ref, sd_ref, pd_ref, vt_ref,
                  soff_ref, poff_ref, vp_ref):
    # Fused shape + pose blend for one lane tile of the flattened 3*V axis.
    #   shape_off (B, tile) = betas (B, NB)  @ shapedirs (NB, tile)      [MXU, bf16 in]
    #   pose_off  (B, tile) = pose_feat (B, P) @ posedirs (P, tile)      [MXU, bf16 in]
    #   v_posed   (B, tile) = v_template + shape_off + pose_off          [VPU]
    soff = jnp.dot(betas_ref[...], sd_ref[...], preferred_element_type=jnp.float32)
    poff = jnp.dot(pf_ref[...], pd_ref[...], preferred_element_type=jnp.float32)
    soff_ref[...] = soff
    poff_ref[...] = poff
    vp_ref[...] = vt_ref[...] + soff + poff


def _make_skin_kernel(batch):
    def _skin_kernel(a_ref, wT_ref, vp_ref, t_ref, v_ref):
        # Batch stacked into the MXU M dimension:
        #   T (B*16, V) = A_flat (B*16, J) @ lbs_weights^T (J, V)   [MXU, bf16 in]
        # Per-vertex 4x4 transform applied row-by-row (direct row stores, no concat):
        #   verts[b*3+r] = sum_c T[b*16+4r+c] * vp[b*3+c] + T[b*16+4r+3]
        T = jnp.dot(a_ref[...], wT_ref[...], preferred_element_type=jnp.float32)
        t_ref[...] = T
        vp = vp_ref[...]
        for b in range(batch):
            for r in range(3):
                base = b * 16 + 4 * r
                acc = T[base + 3:base + 4, :]                   # translation row
                for c in range(3):
                    acc = acc + T[base + c:base + c + 1, :] * vp[b * 3 + c:b * 3 + c + 1, :]
                v_ref[b * 3 + r:b * 3 + r + 1, :] = acc
    return _skin_kernel


# ============================== pallas_call wrappers ==========================

def blend_fused(betas16, pf16, sd2, pd2, vt_flat):
    B, nb = betas16.shape
    P = pf16.shape[1]
    three_v = sd2.shape[1]
    tile = _pick_tile(three_v)
    grid = (three_v // tile,)
    return pl.pallas_call(
        _blend_kernel,
        grid=grid,
        in_specs=[pl.BlockSpec((B, nb), lambda n: (0, 0)),
                  pl.BlockSpec((B, P), lambda n: (0, 0)),
                  pl.BlockSpec((nb, tile), lambda n: (0, n)),
                  pl.BlockSpec((P, tile), lambda n: (0, n)),
                  pl.BlockSpec((1, tile), lambda n: (0, n))],
        out_specs=(pl.BlockSpec((B, tile), lambda n: (0, n)),
                   pl.BlockSpec((B, tile), lambda n: (0, n)),
                   pl.BlockSpec((B, tile), lambda n: (0, n))),
        out_shape=(jax.ShapeDtypeStruct((B, three_v), jnp.float32),
                   jax.ShapeDtypeStruct((B, three_v), jnp.float32),
                   jax.ShapeDtypeStruct((B, three_v), jnp.float32)),
        compiler_params=_PAR,
    )(betas16, pf16, sd2, pd2, vt_flat)


def lbs_skin(a16, wT, vp6, batch):
    B16, J = a16.shape
    V = wT.shape[1]
    tile_v = _pick_tile(V)
    grid = (V // tile_v,)
    return pl.pallas_call(
        _make_skin_kernel(batch),
        grid=grid,
        in_specs=[pl.BlockSpec((B16, J), lambda n: (0, 0)),
                  pl.BlockSpec((J, tile_v), lambda n: (0, n)),
                  pl.BlockSpec((batch * 3, tile_v), lambda n: (0, n))],
        out_specs=(pl.BlockSpec((B16, tile_v), lambda n: (0, n)),
                   pl.BlockSpec((batch * 3, tile_v), lambda n: (0, n))),
        out_shape=(jax.ShapeDtypeStruct((B16, V), jnp.float32),
                   jax.ShapeDtypeStruct((batch * 3, V), jnp.float32)),
        compiler_params=_PAR,
    )(a16, wT, vp6)


# ============================== plain-JAX glue ================================

def batch_rodrigues(rot_vecs):
    # axis-angle (N, 3) -> rotation matrices (N, 3, 3), same formula as smplx.
    angle = jnp.linalg.norm(rot_vecs + 1e-8, axis=1, keepdims=True)      # (N, 1)
    rot_dir = rot_vecs / angle
    cos = jnp.cos(angle)[..., None]                                      # (N, 1, 1)
    sin = jnp.sin(angle)[..., None]
    rx, ry, rz = rot_dir[:, 0:1], rot_dir[:, 1:2], rot_dir[:, 2:3]
    zeros = jnp.zeros_like(rx)
    K = jnp.concatenate([zeros, -rz, ry, rz, zeros, -rx, -ry, rx, zeros],
                        axis=1).reshape(-1, 3, 3)
    ident = jnp.eye(3, dtype=rot_vecs.dtype)[None]
    return ident + sin * K + (1.0 - cos) * jnp.matmul(K, K)


def transform_mat(R, t):
    R_pad = jnp.pad(R, ((0, 0), (0, 1), (0, 0)))                          # (N, 4, 3)
    t_pad = jnp.pad(t, ((0, 0), (0, 1), (0, 0)), constant_values=1.0)     # (N, 4, 1)
    return jnp.concatenate([R_pad, t_pad], axis=2)                        # (N, 4, 4)


def batch_rigid_transform(rot_mats, joints):
    # sequential 24-joint kinematic chain (tiny, stays in JAX glue)
    B, J = joints.shape[0], joints.shape[1]
    joints = joints[..., None]                                            # (B, J, 3, 1)
    rel_joints = jnp.concatenate(
        [joints[:, :1], joints[:, 1:] - joints[:, PARENTS[1:]]], axis=1)
    transforms_mat = transform_mat(rot_mats.reshape(-1, 3, 3),
                                   rel_joints.reshape(-1, 3, 1)).reshape(B, J, 4, 4)
    chain = [transforms_mat[:, 0]]
    for i in range(1, J):
        chain.append(jnp.matmul(chain[int(PARENTS[i])], transforms_mat[:, i]))
    transforms = jnp.stack(chain, axis=1)                                 # (B, J, 4, 4)
    posed_joints = transforms[:, :, :3, 3]
    joints_homogen = jnp.pad(joints, ((0, 0), (0, 0), (0, 1), (0, 0)))
    tj = jnp.matmul(transforms, joints_homogen)                           # (B, J, 4, 1)
    rel_transforms = transforms - jnp.pad(tj, ((0, 0), (0, 0), (0, 0), (3, 0)))
    return posed_joints, rel_transforms


def prepare_smpl_buffers(bufs):
    """One-time rearrangement to kernel-friendly, coordinate-major bf16 layouts."""
    V = bufs['v_template'].shape[0]
    nb = bufs['shapedirs'].shape[2]
    P = bufs['posedirs'].shape[0]
    # flat index = k*V + v  (vertex index on the 128-lane axis)
    sd2 = jnp.transpose(bufs['shapedirs'], (2, 1, 0)).reshape(nb, 3 * V).astype(jnp.bfloat16)
    pd2 = bufs['posedirs'].reshape(P, V, 3).transpose(0, 2, 1)\
                          .reshape(P, 3 * V).astype(jnp.bfloat16)
    vt_flat = bufs['v_template'].T.reshape(1, 3 * V).astype(jnp.float32)
    wT = bufs['lbs_weights'].T.astype(jnp.bfloat16)                       # (J, V)
    return {'sd2': sd2, 'pd2': pd2, 'vt_flat': vt_flat, 'wT': wT,
            'v_template': bufs['v_template'], 'J_regressor': bufs['J_regressor']}


def lbs_pallas(betas, full_pose, prep):
    B = betas.shape[0]
    V = prep['v_template'].shape[0]
    J = NUM_JOINTS

    # pose feature depends only on full_pose -> compute before the fused blend kernel
    rot_mats = batch_rodrigues(full_pose.reshape(-1, 3)).reshape(B, J, 3, 3)
    pose_feature = (rot_mats[:, 1:] - jnp.eye(3, dtype=rot_mats.dtype)).reshape(B, -1)

    # fused shape + pose blend (bf16 streams, f32 accumulation); v_shaped never hits HBM
    shape_off_flat, pose_off_flat, v_posed_flat = blend_fused(
        betas.astype(jnp.bfloat16), pose_feature.astype(jnp.bfloat16),
        prep['sd2'], prep['pd2'], prep['vt_flat'])                        # each (B, 3V)

    shape_offset = shape_off_flat.reshape(B, 3, V).transpose(0, 2, 1)     # (B, V, 3)
    pose_offset = pose_off_flat.reshape(B, 3, V).transpose(0, 2, 1)

    # joint regression: ~40 KFLOPs -> plain JAX (not worth a launch / masked 24-lane store)
    v_shaped = prep['v_template'][None] + shape_offset                    # (B, V, 3)
    joints = jnp.einsum('bvk,jv->bjk', v_shaped, prep['J_regressor'],
                        precision=jax.lax.Precision.HIGHEST)              # (B, J, 3)

    J_transformed, A = batch_rigid_transform(rot_mats, joints)            # (B,J,3) (B,J,4,4)

    # skinning: batch stacked into the MXU M dimension
    a16 = A.reshape(B, J, 16).transpose(0, 2, 1).reshape(B * 16, J).astype(jnp.bfloat16)
    vp6 = v_posed_flat.reshape(B * 3, V)                                  # free reshape
    t16, verts6 = lbs_skin(a16, prep['wT'], vp6, B)                       # (B*16,V) (B*3,V)

    vertices = verts6.reshape(B, 3, V).transpose(0, 2, 1)                 # (B, V, 3)
    T = t16.reshape(B, 16, V).transpose(0, 2, 1).reshape(B, V, 4, 4)
    return vertices, J_transformed, A, T, shape_offset, pose_offset


def _postprocess(vertices, joints, A, T, betas, global_orient, body_pose,
                 full_pose, transl, scale, shape_offset, pose_offset):
    # vertex_joint_selector: append extra joints selected from the mesh vertices
    extra = vertices[:, EXTRA_JOINT_IDS, :]
    joints = jnp.concatenate([joints, extra], axis=1)
    # apply translation
    joints = joints + transl[:, None, :]
    vertices = vertices + transl[:, None, :]
    A = A.at[..., :3, 3].add(transl[:, None, :])
    T = T.at[..., :3, 3].add(transl[:, None, :])
    # apply scale
    joints = joints * scale.reshape(-1, 1, 1)
    vertices = vertices * scale.reshape(-1, 1, 1)
    A = A.at[..., :3, :3].multiply(scale.reshape(-1, 1, 1, 1))
    T = T.at[..., :3, :3].multiply(scale.reshape(-1, 1, 1, 1))
    return {'vertices': vertices, 'global_orient': global_orient, 'body_pose': body_pose,
            'joints': joints, 'betas': betas, 'full_pose': full_pose, 'A': A, 'T': T,
            'shape_offset': shape_offset, 'pose_offset': pose_offset}


def smpl_forward_pallas(betas, global_orient, body_pose, transl, prep, scale=None):
    B = betas.shape[0]
    full_pose = jnp.concatenate([global_orient, body_pose], axis=1)
    if scale is None:
        scale = jnp.ones((B, 1), dtype=global_orient.dtype)
    vertices, joints, A, T, shape_off, pose_off = lbs_pallas(betas, full_pose, prep)
    return _postprocess(vertices, joints, A, T, betas, global_orient, body_pose,
                        full_pose, transl, scale, shape_off, pose_off)


# ----------------------- pure-JAX reference (for checking) -------------------

def lbs_reference(betas, full_pose, bufs):
    hp = jax.lax.Precision.HIGHEST
    B = betas.shape[0]
    V = bufs['v_template'].shape[0]
    J = NUM_JOINTS
    shape_off = jnp.einsum('bl,vkl->bvk', betas, bufs['shapedirs'], precision=hp)
    v_shaped = bufs['v_template'][None] + shape_off
    joints = jnp.einsum('bvk,jv->bjk', v_shaped, bufs['J_regressor'], precision=hp)
    rot_mats = batch_rodrigues(full_pose.reshape(-1, 3)).reshape(B, J, 3, 3)
    pose_feature = (rot_mats[:, 1:] - jnp.eye(3)).reshape(B, -1)
    pose_off = jnp.einsum('bp,pn->bn', pose_feature, bufs['posedirs'],
                          precision=hp).reshape(B, V, 3)
    v_posed = v_shaped + pose_off
    J_transformed, A = batch_rigid_transform(rot_mats, joints)
    T = jnp.einsum('vj,bjn->bvn', bufs['lbs_weights'], A.reshape(B, J, 16),
                   precision=hp).reshape(B, V, 4, 4)
    v_posed_h = jnp.concatenate([v_posed, jnp.ones((B, V, 1), v_posed.dtype)], axis=2)
    vertices = jnp.einsum('bvrc,bvc->bvr', T, v_posed_h, precision=hp)[..., :3]
    return vertices, J_transformed, A, T, shape_off, pose_off


def smpl_forward_reference(betas, global_orient, body_pose, transl, bufs, scale=None):
    B = betas.shape[0]
    full_pose = jnp.concatenate([global_orient, body_pose], axis=1)
    if scale is None:
        scale = jnp.ones((B, 1), dtype=global_orient.dtype)
    vertices, joints, A, T, shape_off, pose_off = lbs_reference(betas, full_pose, bufs)
    return _postprocess(vertices, joints, A, T, betas, global_orient, body_pose,
                        full_pose, transl, scale, shape_off, pose_off)


# ==================================== main ====================================

if __name__ == "__main__":
    key = jax.random.PRNGKey(0)
    k = jax.random.split(key, 9)

    # deterministic synthetic SMPL buffers (shapes follow the module's __init__)
    # TODO(synk): real SMPL loads these from a pickle; synthetic deterministic init here.
    posedirs_raw = 0.01 * jax.random.normal(k[2], (NUM_VERTS, 3, NUM_POSE_BASIS), jnp.float32)
    bufs = {
        'v_template': 0.5 * jax.random.normal(k[0], (NUM_VERTS, 3), jnp.float32),
        'shapedirs': 0.03 * jax.random.normal(k[1], (NUM_VERTS, 3, NUM_BETAS), jnp.float32),
        # registered as in the module: reshape(V*3, P).T -> (P, V*3)
        'posedirs': posedirs_raw.reshape(NUM_VERTS * 3, NUM_POSE_BASIS).T,
        'J_regressor': jax.nn.softmax(
            jax.random.normal(k[3], (NUM_JOINTS, NUM_VERTS), jnp.float32), axis=-1),
        'lbs_weights': jax.nn.softmax(
            2.0 * jax.random.normal(k[4], (NUM_VERTS, NUM_JOINTS), jnp.float32), axis=-1),
    }

    # forward inputs (the module's parameters betas / global_orient / body_pose / transl)
    betas = 0.5 * jax.random.normal(k[5], (BATCH, NUM_BETAS), jnp.float32)
    global_orient = 0.2 * jax.random.normal(k[6], (BATCH, 3), jnp.float32)
    body_pose = 0.2 * jax.random.normal(k[7], (BATCH, NUM_BODY_JOINTS * 3), jnp.float32)
    transl = 0.1 * jax.random.normal(k[8], (BATCH, 3), jnp.float32)

    # one-time buffer rearrangement / bf16 cast (hoisted out of the jitted forward)
    prep = jax.tree_util.tree_map(jax.block_until_ready, prepare_smpl_buffers(bufs))

    out = jax.jit(smpl_forward_pallas)(betas, global_orient, body_pose, transl, prep)
    jax.block_until_ready(out)

    ref = smpl_forward_reference(betas, global_orient, body_pose, transl, bufs)
    for name in ('vertices', 'joints', 'A', 'T', 'shape_offset', 'pose_offset'):
        np.testing.assert_allclose(np.asarray(out[name]), np.asarray(ref[name]),
                                   rtol=5e-2, atol=5e-2)

    print("KERNEL_OK")
</pallas_src>

<mosaic_0001>
module attributes {stable_mosaic.version = 11 : i64} {
  func.func @_blend_kernel(%arg0: i32, %arg1: memref<2x10xbf16, #tpu.memory_space<vmem>>, %arg2: memref<2x207xbf16, #tpu.memory_space<vmem>>, %arg3: memref<10x768xbf16, #tpu.memory_space<vmem>>, %arg4: memref<207x768xbf16, #tpu.memory_space<vmem>>, %arg5: memref<1x768xf32, #tpu.memory_space<vmem>>, %arg6: memref<2x768xf32, #tpu.memory_space<vmem>>, %arg7: memref<2x768xf32, #tpu.memory_space<vmem>>, %arg8: memref<2x768xf32, #tpu.memory_space<vmem>>) attributes {dimension_semantics = [#tpu.dimension_semantics<parallel>], iteration_bounds = array<i64: 1>, scalar_prefetch = 0 : i64, scratch_operands = 0 : i64, tpu.core_type = #tpu.core_type<tc>, window_params = [{pipeline_mode = #tpu.pipeline_mode<synchronous>, transform_indices = @transform_0, window_bounds = array<i64: 2, 10>}, {pipeline_mode = #tpu.pipeline_mode<synchronous>, transform_indices = @transform_1, window_bounds = array<i64: 2, 207>}, {transform_indices = @transform_2, window_bounds = array<i64: 10, 768>}, {transform_indices = @transform_3, window_bounds = array<i64: 207, 768>}, {transform_indices = @transform_4, window_bounds = array<i64: 1, 768>}, {transform_indices = @transform_5, window_bounds = array<i64: 2, 768>}, {transform_indices = @transform_6, window_bounds = array<i64: 2, 768>}, {transform_indices = @transform_7, window_bounds = array<i64: 2, 768>}]} {
    %c0 = arith.constant 0 : index
    %c0_0 = arith.constant 0 : index
    %0 = vector.load %arg1[%c0, %c0_0] : memref<2x10xbf16, #tpu.memory_space<vmem>>, vector<2x10xbf16>
    %c0_1 = arith.constant 0 : index
    %c0_2 = arith.constant 0 : index
    %1 = vector.load %arg3[%c0_1, %c0_2] : memref<10x768xbf16, #tpu.memory_space<vmem>>, vector<10x768xbf16>
    %cst = arith.constant dense<0.000000e+00> : vector<2x768xf32>
    %2 = tpu.matmul %0, %1, %cst {dimension_numbers = #tpu.dot_dimension_numbers<[1], [0], [0], [1], [0, 0, 1, 1], [], []>} : vector<2x10xbf16>, vector<10x768xbf16>, vector<2x768xf32> -> vector<2x768xf32>
    %c0_3 = arith.constant 0 : index
    %c0_4 = arith.constant 0 : index
    %3 = vector.load %arg2[%c0_3, %c0_4] : memref<2x207xbf16, #tpu.memory_space<vmem>>, vector<2x207xbf16>
    %c0_5 = arith.constant 0 : index
    %c0_6 = arith.constant 0 : index
    %4 = vector.load %arg4[%c0_5, %c0_6] : memref<207x768xbf16, #tpu.memory_space<vmem>>, vector<207x768xbf16>
    %cst_7 = arith.constant dense<0.000000e+00> : vector<2x768xf32>
    %5 = tpu.matmul %3, %4, %cst_7 {dimension_numbers = #tpu.dot_dimension_numbers<[1], [0], [0], [1], [0, 0, 1, 1], [], []>} : vector<2x207xbf16>, vector<207x768xbf16>, vector<2x768xf32> -> vector<2x768xf32>
    %c0_8 = arith.constant 0 : index
    %c0_9 = arith.constant 0 : index
    %6 = vector.load %arg6[%c0_8, %c0_9] : memref<2x768xf32, #tpu.memory_space<vmem>>, vector<2x768xf32>
    tpu.vector_store %arg6[%c0_8, %c0_9], %2 {strides = array<i32>} : memref<2x768xf32, #tpu.memory_space<vmem>>, vector<2x768xf32>,
    %c0_10 = arith.constant 0 : index
    %c0_11 = arith.constant 0 : index
    %7 = vector.load %arg7[%c0_10, %c0_11] : memref<2x768xf32, #tpu.memory_space<vmem>>, vector<2x768xf32>
    tpu.vector_store %arg7[%c0_10, %c0_11], %5 {strides = array<i32>} : memref<2x768xf32, #tpu.memory_space<vmem>>, vector<2x768xf32>,
    %c0_12 = arith.constant 0 : index
    %c0_13 = arith.constant 0 : index
    %8 = vector.load %arg5[%c0_12, %c0_13] : memref<1x768xf32, #tpu.memory_space<vmem>>, vector<1x768xf32>
    %9 = vector.broadcast %8 : vector<1x768xf32> to vector<2x768xf32>
    %10 = arith.addf %9, %2 : vector<2x768xf32>
    %11 = arith.addf %10, %5 : vector<2x768xf32>
    %c0_14 = arith.constant 0 : index
    %c0_15 = arith.constant 0 : index
    %12 = vector.load %arg8[%c0_14, %c0_15] : memref<2x768xf32, #tpu.memory_space<vmem>>, vector<2x768xf32>
    tpu.vector_store %arg8[%c0_14, %c0_15], %11 {strides = array<i32>} : memref<2x768xf32, #tpu.memory_space<vmem>>, vector<2x768xf32>,
    return
  }
  func.func @transform_0(%arg0: i32) -> (i32, i32) {
    %c0_i32 = arith.constant 0 : i32
    %c0_i32_0 = arith.constant 0 : i32
    %c0_i32_1 = arith.constant 0 : i32
    return %c0_i32, %c0_i32_0 : i32, i32
  }
  func.func @transform_1(%arg0: i32) -> (i32, i32) {
    %c0_i32 = arith.constant 0 : i32
    %c0_i32_0 = arith.constant 0 : i32
    %c0_i32_1 = arith.constant 0 : i32
    return %c0_i32, %c0_i32_0 : i32, i32
  }
  func.func @transform_2(%arg0: i32) -> (i32, i32) {
    %c0_i32 = arith.constant 0 : i32
    %c0_i32_0 = arith.constant 0 : i32
    return %c0_i32, %arg0 : i32, i32
  }
  func.func @transform_3(%arg0: i32) -> (i32, i32) {
    %c0_i32 = arith.constant 0 : i32
    %c0_i32_0 = arith.constant 0 : i32
    return %c0_i32, %arg0 : i32, i32
  }
  func.func @transform_4(%arg0: i32) -> (i32, i32) {
    %c0_i32 = arith.constant 0 : i32
    %c0_i32_0 = arith.constant 0 : i32
    return %c0_i32, %arg0 : i32, i32
  }
  func.func @transform_5(%arg0: i32) -> (i32, i32) {
    %c0_i32 = arith.constant 0 : i32
    %c0_i32_0 = arith.constant 0 : i32
    return %c0_i32, %arg0 : i32, i32
  }
  func.func @transform_6(%arg0: i32) -> (i32, i32) {
    %c0_i32 = arith.constant 0 : i32
    %c0_i32_0 = arith.constant 0 : i32
    return %c0_i32, %arg0 : i32, i32
  }
  func.func @transform_7(%arg0: i32) -> (i32, i32) {
    %c0_i32 = arith.constant 0 : i32
    %c0_i32_0 = arith.constant 0 : i32
    return %c0_i32, %arg0 : i32, i32
  }
}

module attributes {stable_mosaic.version = 11 : i64} {
  func.func @_skin_kernel(%arg0: i32, %arg1: memref<32x24xbf16, #tpu.memory_space<vmem>>, %arg2: memref<24x256xbf16, #tpu.memory_space<vmem>>, %arg3: memref<6x256xf32, #tpu.memory_space<vmem>>, %arg4: memref<32x256xf32, #tpu.memory_space<vmem>>, %arg5: memref<6x256xf32, #tpu.memory_space<vmem>>) attributes {dimension_semantics = [#tpu.dimension_semantics<parallel>], iteration_bounds = array<i64: 1>, scalar_prefetch = 0 : i64, scratch_operands = 0 : i64, tpu.core_type = #tpu.core_type<tc>, window_params = [{pipeline_mode = #tpu.pipeline_mode<synchronous>, transform_indices = @transform_0, window_bounds = array<i64: 32, 24>}, {transform_indices = @transform_1, window_bounds = array<i64: 24, 256>}, {transform_indices = @transform_2, window_bounds = array<i64: 6, 256>}, {transform_indices = @transform_3, window_bounds = array<i64: 32, 256>}, {transform_indices = @transform_4, window_bounds = array<i64: 6, 256>}]} {
    %c0 = arith.constant 0 : index
    %c0_0 = arith.constant 0 : index
    %0 = vector.load %arg1[%c0, %c0_0] : memref<32x24xbf16, #tpu.memory_space<vmem>>, vector<32x24xbf16>
    %c0_1 = arith.constant 0 : index
    %c0_2 = arith.constant 0 : index
    %1 = vector.load %arg2[%c0_1, %c0_2] : memref<24x256xbf16, #tpu.memory_space<vmem>>, vector<24x256xbf16>
    %cst = arith.constant dense<0.000000e+00> : vector<32x256xf32>
    %2 = tpu.matmul %0, %1, %cst {dimension_numbers = #tpu.dot_dimension_numbers<[1], [0], [0], [1], [0, 0, 1, 1], [], []>} : vector<32x24xbf16>, vector<24x256xbf16>, vector<32x256xf32> -> vector<32x256xf32>
    %c0_3 = arith.constant 0 : index
    %c0_4 = arith.constant 0 : index
    %3 = vector.load %arg4[%c0_3, %c0_4] : memref<32x256xf32, #tpu.memory_space<vmem>>, vector<32x256xf32>
    tpu.vector_store %arg4[%c0_3, %c0_4], %2 {strides = array<i32>} : memref<32x256xf32, #tpu.memory_space<vmem>>, vector<32x256xf32>,
    %c0_5 = arith.constant 0 : index
    %c0_6 = arith.constant 0 : index
    %4 = vector.load %arg3[%c0_5, %c0_6] : memref<6x256xf32, #tpu.memory_space<vmem>>, vector<6x256xf32>
    %5 = vector.extract_strided_slice %2 {offsets = [3, 0], sizes = [1, 256], strides = [1, 1]} : vector<32x256xf32> to vector<1x256xf32>
    %6 = vector.extract_strided_slice %2 {offsets = [0, 0], sizes = [1, 256], strides = [1, 1]} : vector<32x256xf32> to vector<1x256xf32>
    %7 = vector.extract_strided_slice %4 {offsets = [0, 0], sizes = [1, 256], strides = [1, 1]} : vector<6x256xf32> to vector<1x256xf32>
    %8 = arith.mulf %6, %7 : vector<1x256xf32>
    %9 = arith.addf %5, %8 : vector<1x256xf32>
    %10 = vector.extract_strided_slice %2 {offsets = [1, 0], sizes = [1, 256], strides = [1, 1]} : vector<32x256xf32> to vector<1x256xf32>
    %11 = vector.extract_strided_slice %4 {offsets = [1, 0], sizes = [1, 256], strides = [1, 1]} : vector<6x256xf32> to vector<1x256xf32>
    %12 = arith.mulf %10, %11 : vector<1x256xf32>
    %13 = arith.addf %9, %12 : vector<1x256xf32>
    %14 = vector.extract_strided_slice %2 {offsets = [2, 0], sizes = [1, 256], strides = [1, 1]} : vector<32x256xf32> to vector<1x256xf32>
    %15 = vector.extract_strided_slice %4 {offsets = [2, 0], sizes = [1, 256], strides = [1, 1]} : vector<6x256xf32> to vector<1x256xf32>
    %16 = arith.mulf %14, %15 : vector<1x256xf32>
    %17 = arith.addf %13, %16 : vector<1x256xf32>
    %c0_7 = arith.constant 0 : index
    %c0_8 = arith.constant 0 : index
    %18 = vector.load %arg5[%c0_7, %c0_8] : memref<6x256xf32, #tpu.memory_space<vmem>>, vector<1x256xf32>
    tpu.vector_store %arg5[%c0_7, %c0_8], %17 {strides = array<i32>} : memref<6x256xf32, #tpu.memory_space<vmem>>, vector<1x256xf32>,
    %19 = vector.extract_strided_slice %2 {offsets = [7, 0], sizes = [1, 256], strides = [1, 1]} : vector<32x256xf32> to vector<1x256xf32>
    %20 = vector.extract_strided_slice %2 {offsets = [4, 0], sizes = [1, 256], strides = [1, 1]} : vector<32x256xf32> to vector<1x256xf32>
    %21 = vector.extract_strided_slice %4 {offsets = [0, 0], sizes = [1, 256], strides = [1, 1]} : vector<6x256xf32> to vector<1x256xf32>
    %22 = arith.mulf %20, %21 : vector<1x256xf32>
    %23 = arith.addf %19, %22 : vector<1x256xf32>
    %24 = vector.extract_strided_slice %2 {offsets = [5, 0], sizes = [1, 256], strides = [1, 1]} : vector<32x256xf32> to vector<1x256xf32>
    %25 = vector.extract_strided_slice %4 {offsets = [1, 0], sizes = [1, 256], strides = [1, 1]} : vector<6x256xf32> to vector<1x256xf32>
    %26 = arith.mulf %24, %25 : vector<1x256xf32>
    %27 = arith.addf %23, %26 : vector<1x256xf32>
    %28 = vector.extract_strided_slice %2 {offsets = [6, 0], sizes = [1, 256], strides = [1, 1]} : vector<32x256xf32> to vector<1x256xf32>
    %29 = vector.extract_strided_slice %4 {offsets = [2, 0], sizes = [1, 256], strides = [1, 1]} : vector<6x256xf32> to vector<1x256xf32>
    %30 = arith.mulf %28, %29 : vector<1x256xf32>
    %31 = arith.addf %27, %30 : vector<1x256xf32>
    %c1 = arith.constant 1 : index
    %c0_9 = arith.constant 0 : index
    %32 = vector.load %arg5[%c1, %c0_9] : memref<6x256xf32, #tpu.memory_space<vmem>>, vector<1x256xf32>
    tpu.vector_store %arg5[%c1, %c0_9], %31 {strides = array<i32>} : memref<6x256xf32, #tpu.memory_space<vmem>>, vector<1x256xf32>,
    %33 = vector.extract_strided_slice %2 {offsets = [11, 0], sizes = [1, 256], strides = [1, 1]} : vector<32x256xf32> to vector<1x256xf32>
    %34 = vector.extract_strided_slice %2 {offsets = [8, 0], sizes = [1, 256], strides = [1, 1]} : vector<32x256xf32> to vector<1x256xf32>
    %35 = vector.extract_strided_slice %4 {offsets = [0, 0], sizes = [1, 256], strides = [1, 1]} : vector<6x256xf32> to vector<1x256xf32>
    %36 = arith.mulf %34, %35 : vector<1x256xf32>
    %37 = arith.addf %33, %36 : vector<1x256xf32>
    %38 = vector.extract_strided_slice %2 {offsets = [9, 0], sizes = [1, 256], strides = [1, 1]} : vector<32x256xf32> to vector<1x256xf32>
    %39 = vector.extract_strided_slice %4 {offsets = [1, 0], sizes = [1, 256], strides = [1, 1]} : vector<6x256xf32> to vector<1x256xf32>
    %40 = arith.mulf %38, %39 : vector<1x256xf32>
    %41 = arith.addf %37, %40 : vector<1x256xf32>
    %42 = vector.extract_strided_slice %2 {offsets = [10, 0], sizes = [1, 256], strides = [1, 1]} : vector<32x256xf32> to vector<1x256xf32>
    %43 = vector.extract_strided_slice %4 {offsets = [2, 0], sizes = [1, 256], strides = [1, 1]} : vector<6x256xf32> to vector<1x256xf32>
    %44 = arith.mulf %42, %43 : vector<1x256xf32>
    %45 = arith.addf %41, %44 : vector<1x256xf32>
    %c2 = arith.constant 2 : index
    %c0_10 = arith.constant 0 : index
    %46 = vector.load %arg5[%c2, %c0_10] : memref<6x256xf32, #tpu.memory_space<vmem>>, vector<1x256xf32>
    tpu.vector_store %arg5[%c2, %c0_10], %45 {strides = array<i32>} : memref<6x256xf32, #tpu.memory_space<vmem>>, vector<1x256xf32>,
    %47 = vector.extract_strided_slice %2 {offsets = [19, 0], sizes = [1, 256], strides = [1, 1]} : vector<32x256xf32> to vector<1x256xf32>
    %48 = vector.extract_strided_slice %2 {offsets = [16, 0], sizes = [1, 256], strides = [1, 1]} : vector<32x256xf32> to vector<1x256xf32>
    %49 = vector.extract_strided_slice %4 {offsets = [3, 0], sizes = [1, 256], strides = [1, 1]} : vector<6x256xf32> to vector<1x256xf32>
    %50 = arith.mulf %48, %49 : vector<1x256xf32>
    %51 = arith.addf %47, %50 : vector<1x256xf32>
    %52 = vector.extract_strided_slice %2 {offsets = [17, 0], sizes = [1, 256], strides = [1, 1]} : vector<32x256xf32> to vector<1x256xf32>
    %53 = vector.extract_strided_slice %4 {offsets = [4, 0], sizes = [1, 256], strides = [1, 1]} : vector<6x256xf32> to vector<1x256xf32>
    %54 = arith.mulf %52, %53 : vector<1x256xf32>
    %55 = arith.addf %51, %54 : vector<1x256xf32>
    %56 = vector.extract_strided_slice %2 {offsets = [18, 0], sizes = [1, 256], strides = [1, 1]} : vector<32x256xf32> to vector<1x256xf32>
    %57 = vector.extract_strided_slice %4 {offsets = [5, 0], sizes = [1, 256], strides = [1, 1]} : vector<6x256xf32> to vector<1x256xf32>
    %58 = arith.mulf %56, %57 : vector<1x256xf32>
    %59 = arith.addf %55, %58 : vector<1x256xf32>
    %c3 = arith.constant 3 : index
    %c0_11 = arith.constant 0 : index
    %60 = vector.load %arg5[%c3, %c0_11] : memref<6x256xf32, #tpu.memory_space<vmem>>, vector<1x256xf32>
    tpu.vector_store %arg5[%c3, %c0_11], %59 {strides = array<i32>} : memref<6x256xf32, #tpu.memory_space<vmem>>, vector<1x256xf32>,
    %61 = vector.extract_strided_slice %2 {offsets = [23, 0], sizes = [1, 256], strides = [1, 1]} : vector<32x256xf32> to vector<1x256xf32>
    %62 = vector.extract_strided_slice %2 {offsets = [20, 0], sizes = [1, 256], strides = [1, 1]} : vector<32x256xf32> to vector<1x256xf32>
    %63 = vector.extract_strided_slice %4 {offsets = [3, 0], sizes = [1, 256], strides = [1, 1]} : vector<6x256xf32> to vector<1x256xf32>
    %64 = arith.mulf %62, %63 : vector<1x256xf32>
    %65 = arith.addf %61, %64 : vector<1x256xf32>
    %66 = vector.extract_strided_slice %2 {offsets = [21, 0], sizes = [1, 256], strides = [1, 1]} : vector<32x256xf32> to vector<1x256xf32>
    %67 = vector.extract_strided_slice %4 {offsets = [4, 0], sizes = [1, 256], strides = [1, 1]} : vector<6x256xf32> to vector<1x256xf32>
    %68 = arith.mulf %66, %67 : vector<1x256xf32>
    %69 = arith.addf %65, %68 : vector<1x256xf32>
    %70 = vector.extract_strided_slice %2 {offsets = [22, 0], sizes = [1, 256], strides = [1, 1]} : vector<32x256xf32> to vector<1x256xf32>
    %71 = vector.extract_strided_slice %4 {offsets = [5, 0], sizes = [1, 256], strides = [1, 1]} : vector<6x256xf32> to vector<1x256xf32>
    %72 = arith.mulf %70, %71 : vector<1x256xf32>
    %73 = arith.addf %69, %72 : vector<1x256xf32>
    %c4 = arith.constant 4 : index
    %c0_12 = arith.constant 0 : index
    %74 = vector.load %arg5[%c4, %c0_12] : memref<6x256xf32, #tpu.memory_space<vmem>>, vector<1x256xf32>
    tpu.vector_store %arg5[%c4, %c0_12], %73 {strides = array<i32>} : memref<6x256xf32, #tpu.memory_space<vmem>>, vector<1x256xf32>,
    %75 = vector.extract_strided_slice %2 {offsets = [27, 0], sizes = [1, 256], strides = [1, 1]} : vector<32x256xf32> to vector<1x256xf32>
    %76 = vector.extract_strided_slice %2 {offsets = [24, 0], sizes = [1, 256], strides = [1, 1]} : vector<32x256xf32> to vector<1x256xf32>
    %77 = vector.extract_strided_slice %4 {offsets = [3, 0], sizes = [1, 256], strides = [1, 1]} : vector<6x256xf32> to vector<1x256xf32>
    %78 = arith.mulf %76, %77 : vector<1x256xf32>
    %79 = arith.addf %75, %78 : vector<1x256xf32>
    %80 = vector.extract_strided_slice %2 {offsets = [25, 0], sizes = [1, 256], strides = [1, 1]} : vector<32x256xf32> to vector<1x256xf32>
    %81 = vector.extract_strided_slice %4 {offsets = [4, 0], sizes = [1, 256], strides = [1, 1]} : vector<6x256xf32> to vector<1x256xf32>
    %82 = arith.mulf %80, %81 : vector<1x256xf32>
    %83 = arith.addf %79, %82 : vector<1x256xf32>
    %84 = vector.extract_strided_slice %2 {offsets = [26, 0], sizes = [1, 256], strides = [1, 1]} : vector<32x256xf32> to vector<1x256xf32>
    %85 = vector.extract_strided_slice %4 {offsets = [5, 0], sizes = [1, 256], strides = [1, 1]} : vector<6x256xf32> to vector<1x256xf32>
    %86 = arith.mulf %84, %85 : vector<1x256xf32>
    %87 = arith.addf %83, %86 : vector<1x256xf32>
    %c5 = arith.constant 5 : index
    %c0_13 = arith.constant 0 : index
    %88 = vector.load %arg5[%c5, %c0_13] : memref<6x256xf32, #tpu.memory_space<vmem>>, vector<1x256xf32>
    tpu.vector_store %arg5[%c5, %c0_13], %87 {strides = array<i32>} : memref<6x256xf32, #tpu.memory_space<vmem>>, vector<1x256xf32>,
    return
  }
  func.func @transform_0(%arg0: i32) -> (i32, i32) {
    %c0_i32 = arith.constant 0 : i32
    %c0_i32_0 = arith.constant 0 : i32
    %c0_i32_1 = arith.constant 0 : i32
    return %c0_i32, %c0_i32_0 : i32, i32
  }
  func.func @transform_1(%arg0: i32) -> (i32, i32) {
    %c0_i32 = arith.constant 0 : i32
    %c0_i32_0 = arith.constant 0 : i32
    return %c0_i32, %arg0 : i32, i32
  }
  func.func @transform_2(%arg0: i32) -> (i32, i32) {
    %c0_i32 = arith.constant 0 : i32
    %c0_i32_0 = arith.constant 0 : i32
    return %c0_i32, %arg0 : i32, i32
  }
  func.func @transform_3(%arg0: i32) -> (i32, i32) {
    %c0_i32 = arith.constant 0 : i32
    %c0_i32_0 = arith.constant 0 : i32
    return %c0_i32, %arg0 : i32, i32
  }
  func.func @transform_4(%arg0: i32) -> (i32, i32) {
    %c0_i32 = arith.constant 0 : i32
    %c0_i32_0 = arith.constant 0 : i32
    return %c0_i32, %arg0 : i32, i32
  }
}

</mosaic_0001>

<llo_original>
// kernel: smpl_forward_pallas.2
$region0: #{smpl_forward_pallas.2}
  #allocation0 [shape = 'u32[]', space=smem, size = 0x4, offset = 0x4, fixed_abs, tag = 'smem constant byte address 0x4 - core index']
  #allocation1 [shape = 'u32[72,128]{1,0:T(1,128)}', space=vmem, size = 0x9000, scoped, tag = 'internal scratch']
  %s0 = inlined_call_operand.vmem [shape: bf16[2,10], index: 0, kind: input, shape index: {}]
  %s1 = inlined_call_operand.vmem [shape: bf16[2,207], index: 1, kind: input, shape index: {}]
  %s2 = inlined_call_operand.vmem [shape: bf16[10,768], index: 2, kind: input, shape index: {}]
  %s3 = inlined_call_operand.vmem [shape: bf16[207,768], index: 3, kind: input, shape index: {}]
  %s4 = inlined_call_operand.vmem [shape: f32[1,768], index: 4, kind: input, shape index: {}]
  %s5 = inlined_call_operand.vmem [shape: f32[2,768], index: 5, kind: output, shape index: {0}]
  %s6 = inlined_call_operand.vmem [shape: f32[2,768], index: 6, kind: output, shape index: {1}]
  %s7 = inlined_call_operand.vmem [shape: f32[2,768], index: 7, kind: output, shape index: {2}]
  %8 = xla_tuple %s5, %s6, %s7
  %s9 = sld [smem:[#allocation0]]
  $region46: #{smpl_forward_pallas.2} parent=0
    _
  %s11 = ssub.s32 1, %s9
  %s12 = scalar_select 0, %s11, %s9
  // Predicated region
  $region2: #{smpl_forward_pallas.2} parent=0 // pred_check
    _
  $region3: #{smpl_forward_pallas.2} parent=0 // pred_check_branch
    %14 = sbr.rel (0) target = $region5
  $region4: #{smpl_forward_pallas.2} parent=0 // pred_region
    _
  $region5: #{smpl_forward_pallas.2} parent=0 // pred_fallthru
    _
  // Predicated region
  $region6: #{smpl_forward_pallas.2} parent=0 // pred_check
    _
  $region7: #{smpl_forward_pallas.2} parent=0 // pred_check_branch
    %16 = sbr.rel (0) target = $region9
  $region8: #{smpl_forward_pallas.2} parent=0 // pred_region
    _
  $region9: #{smpl_forward_pallas.2} parent=0 // pred_fallthru
    _
  // Predicated region
  $region10: #{smpl_forward_pallas.2} parent=0 // pred_check
    _
  $region11: #{smpl_forward_pallas.2} parent=0 // pred_check_branch
    %18 = sbr.rel (0) target = $region13
  $region12: #{smpl_forward_pallas.2} parent=0 // pred_region
    _
  $region13: #{smpl_forward_pallas.2} parent=0 // pred_fallthru
    _
  // Predicated region
  $region14: #{smpl_forward_pallas.2} parent=0 // pred_check
    _
  $region15: #{smpl_forward_pallas.2} parent=0 // pred_check_branch
    %20 = sbr.rel (0) target = $region17
  $region16: #{smpl_forward_pallas.2} parent=0 // pred_region
    _
  $region17: #{smpl_forward_pallas.2} parent=0 // pred_fallthru
    _
  // Predicated region
  $region18: #{smpl_forward_pallas.2} parent=0 // pred_check
    _
  $region19: #{smpl_forward_pallas.2} parent=0 // pred_check_branch
    %22 = sbr.rel (0) target = $region21
  $region20: #{smpl_forward_pallas.2} parent=0 // pred_region
    _
  $region21: #{smpl_forward_pallas.2} parent=0 // pred_fallthru
    _
  %v24 = vld [vmem:[%s0] sm:$0x1]
  %v25 = vld [vmem:[%s2] sm:$0xff]
  %v26 = vld [vmem:[%s2 + $0x8] sm:$0xff]
  %v27 = vld [vmem:[%s2 + $0x10] sm:$0xff]
  %v28 = vld [vmem:[%s2 + $0x18] sm:$0x11]
  %v29 = vld [vmem:[%s2 + $0x20] sm:$0x11]
  %v30 = vld [vmem:[%s2 + $0x28] sm:$0x11]
  %v37 = vunpack.c.l.b16 %v25
  %v38 = vunpack.c.h.b16 %v25
  %v39 = vunpack.c.l.b16 %v26
  %v40 = vunpack.c.h.b16 %v26
  %v41 = vunpack.c.l.b16 %v27
  %v42 = vunpack.c.h.b16 %v27
  %v43 = vunpack.c.l.b16 %v28
  %v44 = vunpack.c.h.b16 %v28
  %v45 = vunpack.c.l.b16 %v29
  %v46 = vunpack.c.h.b16 %v29
  %v47 = vunpack.c.l.b16 %v30
  %v48 = vunpack.c.h.b16 %v30
  %v49 = vpack.c.b16 %v43, %v37
  %v50 = vpack.c.b16 %v44, %v38
  %v51 = vpack.c.b16 %v45, %v39
  %v52 = vpack.c.b16 %v46, %v40
  %v53 = vpack.c.b16 %v47, %v41
  %v54 = vpack.c.b16 %v48, %v42
  %vm55 = vcmask 80896
  %v57 = vsel %vm55, %v24, 0
  %vm59 = vcmask 1044480
  %v61 = vsel %vm59, %v49, 0
  %v64 = vsel %vm59, %v50, 0
  %v67 = vsel %vm59, %v51, 0
  %v70 = vsel %vm59, %v52, 0
  %v73 = vsel %vm59, %v53, 0
  %v76 = vsel %vm59, %v54, 0
  %78 = vmatpush.bf16.msra.mxu0 0
  %79 = vmatpush.bf16.msra.mxu0 0
  %80 = vmatpush.bf16.msra.mxu0 0
  %81 = vmatpush.bf16.msra.mxu0 0
  %82 = vmatpush.bf16.msra.mxu0 0
  %83 = vmatpush.bf16.msra.mxu0 0
  %84 = vmatpush.bf16.msra.mxu0 0
  %85 = vmatpush.bf16.msra.mxu0 %v61
  %86 = vmatmul.bf16.gmra.mxu0 %v57
  %v87 = vpop.f32.mrf.mxu0
  %v88 = vadd.f32 0.0, %v87
  %v89 = vpop.f32.mrf.mxu0
  %90 = vdwg.mxu0
  %91 = vmatpush.bf16.msra.mxu0 0
  %92 = vmatpush.bf16.msra.mxu0 0
  %93 = vmatpush.bf16.msra.mxu0 0
  %94 = vmatpush.bf16.msra.mxu0 0
  %95 = vmatpush.bf16.msra.mxu0 0
  %96 = vmatpush.bf16.msra.mxu0 0
  %97 = vmatpush.bf16.msra.mxu0 0
  %98 = vmatpush.bf16.msra.mxu0 %v64
  %99 = vmatmul.bf16.gmra.mxu0 %v57
  %v100 = vpop.f32.mrf.mxu0
  %v101 = vadd.f32 0.0, %v100
  %v102 = vpop.f32.mrf.mxu0
  %103 = vdwg.mxu0
  %104 = vmatpush.bf16.msra.mxu0 0
  %105 = vmatpush.bf16.msra.mxu0 0
  %106 = vmatpush.bf16.msra.mxu0 0
  %107 = vmatpush.bf16.msra.mxu0 0
  %108 = vmatpush.bf16.msra.mxu0 0
  %109 = vmatpush.bf16.msra.mxu0 0
  %110 = vmatpush.bf16.msra.mxu0 0
  %111 = vmatpush.bf16.msra.mxu0 %v67
  %112 = vmatmul.bf16.gmra.mxu0 %v57
  %v113 = vpop.f32.mrf.mxu0
  %v114 = vadd.f32 0.0, %v113
  %v115 = vpop.f32.mrf.mxu0
  %116 = vdwg.mxu0
  %117 = vmatpush.bf16.msra.mxu0 0
  %118 = vmatpush.bf16.msra.mxu0 0
  %119 = vmatpush.bf16.msra.mxu0 0
  %120 = vmatpush.bf16.msra.mxu0 0
  %121 = vmatpush.bf16.msra.mxu0 0
  %122 = vmatpush.bf16.msra.mxu0 0
  %123 = vmatpush.bf16.msra.mxu0 0
  %124 = vmatpush.bf16.msra.mxu0 %v70
  %125 = vmatmul.bf16.gmra.mxu0 %v57
  %v126 = vpop.f32.mrf.mxu0
  %v127 = vadd.f32 0.0, %v126
  %v128 = vpop.f32.mrf.mxu0
  %129 = vdwg.mxu0
  %130 = vmatpush.bf16.msra.mxu0 0
  %131 = vmatpush.bf16.msra.mxu0 0
  %132 = vmatpush.bf16.msra.mxu0 0
  %133 = vmatpush.bf16.msra.mxu0 0
  %134 = vmatpush.bf16.msra.mxu0 0
  %135 = vmatpush.bf16.msra.mxu0 0
  %136 = vmatpush.bf16.msra.mxu0 0
  %137 = vmatpush.bf16.msra.mxu0 %v73
  %138 = vmatmul.bf16.gmra.mxu0 %v57
  %v139 = vpop.f32.mrf.mxu0
  %v140 = vadd.f32 0.0, %v139
  %v141 = vpop.f32.mrf.mxu0
  %142 = vdwg.mxu0
  %143 = vmatpush.bf16.msra.mxu0 0
  %144 = vmatpush.bf16.msra.mxu0 0
  %145 = vmatpush.bf16.msra.mxu0 0
  %146 = vmatpush.bf16.msra.mxu0 0
  %147 = vmatpush.bf16.msra.mxu0 0
  %148 = vmatpush.bf16.msra.mxu0 0
  %149 = vmatpush.bf16.msra.mxu0 0
  %150 = vmatpush.bf16.msra.mxu0 %v76
  %151 = vmatmul.bf16.gmra.mxu0 %v57
  %v152 = vpop.f32.mrf.mxu0
  %v153 = vadd.f32 0.0, %v152
  %v154 = vpop.f32.mrf.mxu0
  %155 = vdwg.mxu0
  %v156 = vld [vmem:[%s1] sm:$0x3]
  %v157 = vld [vmem:[%s3] sm:$0xff]
  %v158 = vld [vmem:[%s3 + $0x8] sm:$0xff]
  %v159 = vld [vmem:[%s3 + $0x10] sm:$0xff]
  %v160 = vld [vmem:[%s3 + $0x18] sm:$0xff]
  %v161 = vld [vmem:[%s3 + $0x20] sm:$0xff]
  %v162 = vld [vmem:[%s3 + $0x28] sm:$0xff]
  %v163 = vld [vmem:[%s3 + $0x30] sm:$0xff]
  %v164 = vld [vmem:[%s3 + $0x38] sm:$0xff]
  %v165 = vld [vmem:[%s3 + $0x40] sm:$0xff]
  %v166 = vld [vmem:[%s3 + $0x48] sm:$0xff]
  %v167 = vld [vmem:[%s3 + $0x50] sm:$0xff]
  %v168 = vld [vmem:[%s3 + $0x58] sm:$0xff]
  %v169 = vld [vmem:[%s3 + $0x60] sm:$0xff]
  %v170 = vld [vmem:[%s3 + $0x68] sm:$0xff]
  %v171 = vld [vmem:[%s3 + $0x70] sm:$0xff]
  %v172 = vld [vmem:[%s3 + $0x78] sm:$0xff]
  %v173 = vld [vmem:[%s3 + $0x80] sm:$0xff]
  %v174 = vld [vmem:[%s3 + $0x88] sm:$0xff]
  %v175 = vld [vmem:[%s3 + $0x90] sm:$0xff]
  %v176 = vld [vmem:[%s3 + $0x98] sm:$0xff]
  %v177 = vld [vmem:[%s3 + $0xa0] sm:$0xff]
  %v178 = vld [vmem:[%s3 + $0xa8] sm:$0xff]
  %v179 = vld [vmem:[%s3 + $0xb0] sm:$0xff]
  %v180 = vld [vmem:[%s3 + $0xb8] sm:$0xff]
  %v181 = vld [vmem:[%s3 + $0xc0] sm:$0xff]
  %v182 = vld [vmem:[%s3 + $0xc8] sm:$0xff]
  %v183 = vld [vmem:[%s3 + $0xd0] sm:$0xff]
  %v184 = vld [vmem:[%s3 + $0xd8] sm:$0xff]
  %v185 = vld [vmem:[%s3 + $0xe0] sm:$0xff]
  %v186 = vld [vmem:[%s3 + $0xe8] sm:$0xff]
  %v187 = vld [vmem:[%s3 + $0xf0] sm:$0xff]
  %v188 = vld [vmem:[%s3 + $0xf8] sm:$0xff]
  %v189 = vld [vmem:[%s3 + $0x100] sm:$0xff]
  %v190 = vld [vmem:[%s3 + $0x108] sm:$0xff]
  %v191 = vld [vmem:[%s3 + $0x110] sm:$0xff]
  %v192 = vld [vmem:[%s3 + $0x118] sm:$0xff]
  %v193 = vld [vmem:[%s3 + $0x120] sm:$0xff]
  %v194 = vld [vmem:[%s3 + $0x128] sm:$0xff]
  %v195 = vld [vmem:[%s3 + $0x130] sm:$0xff]
  %v196 = vld [vmem:[%s3 + $0x138] sm:$0xff]
  %v197 = vld [vmem:[%s3 + $0x140] sm:$0xff]
  %v198 = vld [vmem:[%s3 + $0x148] sm:$0xff]
  %v199 = vld [vmem:[%s3 + $0x150] sm:$0xff]
  %v200 = vld [vmem:[%s3 + $0x158] sm:$0xff]
  %v201 = vld [vmem:[%s3 + $0x160] sm:$0xff]
  %v202 = vld [vmem:[%s3 + $0x168] sm:$0xff]
  %v203 = vld [vmem:[%s3 + $0x170] sm:$0xff]
  %v204 = vld [vmem:[%s3 + $0x178] sm:$0xff]
  %v205 = vld [vmem:[%s3 + $0x180] sm:$0xff]
  %v206 = vld [vmem:[%s3 + $0x188] sm:$0xff]
  %v207 = vld [vmem:[%s3 + $0x190] sm:$0xff]
  %v208 = vld [vmem:[%s3 + $0x198] sm:$0xff]
  %v209 = vld [vmem:[%s3 + $0x1a0] sm:$0xff]
  %v210 = vld [vmem:[%s3 + $0x1a8] sm:$0xff]
  %v211 = vld [vmem:[%s3 + $0x1b0] sm:$0xff]
  %v212 = vld [vmem:[%s3 + $0x1b8] sm:$0xff]
  %v213 = vld [vmem:[%s3 + $0x1c0] sm:$0xff]
  %v214 = vld [vmem:[%s3 + $0x1c8] sm:$0xff]
  %v215 = vld [vmem:[%s3 + $0x1d0] sm:$0xff]
  %v216 = vld [vmem:[%s3 + $0x1d8] sm:$0xff]
  %v217 = vld [vmem:[%s3 + $0x1e0] sm:$0xff]
  %v218 = vld [vmem:[%s3 + $0x1e8] sm:$0xff]
  %v219 = vld [vmem:[%s3 + $0x1f0] sm:$0xff]
  %v220 = vld [vmem:[%s3 + $0x1f8] sm:$0xff]
  %v221 = vld [vmem:[%s3 + $0x200] sm:$0xff]
  %v222 = vld [vmem:[%s3 + $0x208] sm:$0xff]
  %v223 = vld [vmem:[%s3 + $0x210] sm:$0xff]
  %v224 = vld [vmem:[%s3 + $0x218] sm:$0xff]
  %v225 = vld [vmem:[%s3 + $0x220] sm:$0xff]
  %v226 = vld [vmem:[%s3 + $0x228] sm:$0xff]
  %v227 = vld [vmem:[%s3 + $0x230] sm:$0xff]
  %v228 = vld [vmem:[%s3 + $0x238] sm:$0xff]
  %v229 = vld [vmem:[%s3 + $0x240] sm:$0xff]
  %v230 = vld [vmem:[%s3 + $0x248] sm:$0xff]
  %v231 = vld [vmem:[%s3 + $0x250] sm:$0xff]
  %v232 = vld [vmem:[%s3 + $0x258] sm:$0xff]
  %v233 = vld [vmem:[%s3 + $0x260] sm:$0xff]
  %v234 = vld [vmem:[%s3 + $0x268] sm:$0xff]
  %236 = vst [vmem:[#allocation1] ss:$9 sm:$0xff] %v156
  %v237 = vld [vmem:[#allocation1] sm:$0xff]
  %v238 = vld [vmem:[#allocation1 + $0x9] sm:$0xff]
  %v318 = vunpack.c.l.b16 %v157
  %v319 = vunpack.c.h.b16 %v157
  %v320 = vunpack.c.l.b16 %v158
  %v321 = vunpack.c.h.b16 %v158
  %v322 = vunpack.c.l.b16 %v159
  %v323 = vunpack.c.h.b16 %v159
  %v324 = vunpack.c.l.b16 %v160
  %v325 = vunpack.c.h.b16 %v160
  %v326 = vunpack.c.l.b16 %v161
  %v327 = vunpack.c.h.b16 %v161
  %v328 = vunpack.c.l.b16 %v162
  %v329 = vunpack.c.h.b16 %v162
  %v330 = vunpack.c.l.b16 %v163
  %v331 = vunpack.c.h.b16 %v163
  %v332 = vunpack.c.l.b16 %v164
  %v333 = vunpack.c.h.b16 %v164
  %v334 = vunpack.c.l.b16 %v165
  %v335 = vunpack.c.h.b16 %v165
  %v336 = vunpack.c.l.b16 %v166
  %v337 = vunpack.c.h.b16 %v166
  %v338 = vunpack.c.l.b16 %v167
  %v339 = vunpack.c.h.b16 %v167
  %v340 = vunpack.c.l.b16 %v168
  %v341 = vunpack.c.h.b16 %v168
  %v342 = vunpack.c.l.b16 %v169
  %v343 = vunpack.c.h.b16 %v169
  %v344 = vunpack.c.l.b16 %v170
  %v345 = vunpack.c.h.b16 %v170
  %v346 = vunpack.c.l.b16 %v171
  %v347 = vunpack.c.h.b16 %v171
  %v348 = vunpack.c.l.b16 %v172
  %v349 = vunpack.c.h.b16 %v172
  %v350 = vunpack.c.l.b16 %v173
  %v351 = vunpack.c.h.b16 %v173
  %v352 = vunpack.c.l.b16 %v174
  %v353 = vunpack.c.h.b16 %v174
  %v354 = vunpack.c.l.b16 %v175
  %v355 = vunpack.c.h.b16 %v175
  %v356 = vunpack.c.l.b16 %v176
  %v357 = vunpack.c.h.b16 %v176
  %v358 = vunpack.c.l.b16 %v177
  %v359 = vunpack.c.h.b16 %v177
  %v360 = vunpack.c.l.b16 %v178
  %v361 = vunpack.c.h.b16 %v178
  %v362 = vunpack.c.l.b16 %v179
  %v363 = vunpack.c.h.b16 %v179
  %v364 = vunpack.c.l.b16 %v180
  %v365 = vunpack.c.h.b16 %v180
  %v366 = vunpack.c.l.b16 %v181
  %v367 = vunpack.c.h.b16 %v181
  %v368 = vunpack.c.l.b16 %v182
  %v369 = vunpack.c.h.b16 %v182
  %v370 = vunpack.c.l.b16 %v183
  %v371 = vunpack.c.h.b16 %v183
  %v372 = vunpack.c.l.b16 %v184
  %v373 = vunpack.c.h.b16 %v184
  %v374 = vunpack.c.l.b16 %v185
  %v375 = vunpack.c.h.b16 %v185
  %v376 = vunpack.c.l.b16 %v186
  %v377 = vunpack.c.h.b16 %v186
  %v378 = vunpack.c.l.b16 %v187
  %v379 = vunpack.c.h.b16 %v187
  %v380 = vunpack.c.l.b16 %v188
  %v381 = vunpack.c.h.b16 %v188
  %v382 = vunpack.c.l.b16 %v189
  %v383 = vunpack.c.h.b16 %v189
  %v384 = vunpack.c.l.b16 %v190
  %v385 = vunpack.c.h.b16 %v190
  %v386 = vunpack.c.l.b16 %v191
  %v387 = vunpack.c.h.b16 %v191
  %v388 = vunpack.c.l.b16 %v192
  %v389 = vunpack.c.h.b16 %v192
  %v390 = vunpack.c.l.b16 %v193
  %v391 = vunpack.c.h.b16 %v193
  %v392 = vunpack.c.l.b16 %v194
  %v393 = vunpack.c.h.b16 %v194
  %v394 = vunpack.c.l.b16 %v195
  %v395 = vunpack.c.h.b16 %v195
  %v396 = vunpack.c.l.b16 %v196
  %v397 = vunpack.c.h.b16 %v196
  %v398 = vunpack.c.l.b16 %v197
  %v399 = vunpack.c.h.b16 %v197
  %v400 = vunpack.c.l.b16 %v198
  %v401 = vunpack.c.h.b16 %v198
  %v402 = vunpack.c.l.b16 %v199
  %v403 = vunpack.c.h.b16 %v199
  %v404 = vunpack.c.l.b16 %v200
  %v405 = vunpack.c.h.b16 %v200
  %v406 = vunpack.c.l.b16 %v201
  %v407 = vunpack.c.h.b16 %v201
  %v408 = vunpack.c.l.b16 %v202
  %v409 = vunpack.c.h.b16 %v202
  %v410 = vunpack.c.l.b16 %v203
  %v411 = vunpack.c.h.b16 %v203
  %v412 = vunpack.c.l.b16 %v204
  %v413 = vunpack.c.h.b16 %v204
  %v414 = vunpack.c.l.b16 %v205
  %v415 = vunpack.c.h.b16 %v205
  %v416 = vunpack.c.l.b16 %v206
  %v417 = vunpack.c.h.b16 %v206
  %v418 = vunpack.c.l.b16 %v207
  %v419 = vunpack.c.h.b16 %v207
  %v420 = vunpack.c.l.b16 %v208
  %v421 = vunpack.c.h.b16 %v208
  %v422 = vunpack.c.l.b16 %v209
  %v423 = vunpack.c.h.b16 %v209
  %v424 = vunpack.c.l.b16 %v210
  %v425 = vunpack.c.h.b16 %v210
  %v426 = vunpack.c.l.b16 %v211
  %v427 = vunpack.c.h.b16 %v211
  %v428 = vunpack.c.l.b16 %v212
  %v429 = vunpack.c.h.b16 %v212
  %v430 = vunpack.c.l.b16 %v213
  %v431 = vunpack.c.h.b16 %v213
  %v432 = vunpack.c.l.b16 %v214
  %v433 = vunpack.c.h.b16 %v214
  %v434 = vunpack.c.l.b16 %v215
  %v435 = vunpack.c.h.b16 %v215
  %v436 = vunpack.c.l.b16 %v216
  %v437 = vunpack.c.h.b16 %v216
  %v438 = vunpack.c.l.b16 %v217
  %v439 = vunpack.c.h.b16 %v217
  %v440 = vunpack.c.l.b16 %v218
  %v441 = vunpack.c.h.b16 %v218
  %v442 = vunpack.c.l.b16 %v219
  %v443 = vunpack.c.h.b16 %v219
  %v444 = vunpack.c.l.b16 %v220
  %v445 = vunpack.c.h.b16 %v220
  %v446 = vunpack.c.l.b16 %v221
  %v447 = vunpack.c.h.b16 %v221
  %v448 = vunpack.c.l.b16 %v222
  %v449 = vunpack.c.h.b16 %v222
  %v450 = vunpack.c.l.b16 %v223
  %v451 = vunpack.c.h.b16 %v223
  %v452 = vunpack.c.l.b16 %v224
  %v453 = vunpack.c.h.b16 %v224
  %v454 = vunpack.c.l.b16 %v225
  %v455 = vunpack.c.h.b16 %v225
  %v456 = vunpack.c.l.b16 %v226
  %v457 = vunpack.c.h.b16 %v226
  %v458 = vunpack.c.l.b16 %v227
  %v459 = vunpack.c.h.b16 %v227
  %v460 = vunpack.c.l.b16 %v228
  %v461 = vunpack.c.h.b16 %v228
  %v462 = vunpack.c.l.b16 %v229
  %v463 = vunpack.c.h.b16 %v229
  %v464 = vunpack.c.l.b16 %v230
  %v465 = vunpack.c.h.b16 %v230
  %v466 = vunpack.c.l.b16 %v231
  %v467 = vunpack.c.h.b16 %v231
  %v468 = vunpack.c.l.b16 %v232
  %v469 = vunpack.c.h.b16 %v232
  %v470 = vunpack.c.l.b16 %v233
  %v471 = vunpack.c.h.b16 %v233
  %v472 = vunpack.c.l.b16 %v234
  %v473 = vunpack.c.h.b16 %v234
  %v474 = vpack.c.b16 %v324, %v318
  %v475 = vpack.c.b16 %v325, %v319
  %v476 = vpack.c.b16 %v326, %v320
  %v477 = vpack.c.b16 %v327, %v321
  %v478 = vpack.c.b16 %v328, %v322
  %v479 = vpack.c.b16 %v329, %v323
  %v480 = vpack.c.b16 %v336, %v330
  %v481 = vpack.c.b16 %v337, %v331
  %v482 = vpack.c.b16 %v338, %v332
  %v483 = vpack.c.b16 %v339, %v333
  %v484 = vpack.c.b16 %v340, %v334
  %v485 = vpack.c.b16 %v341, %v335
  %v486 = vpack.c.b16 %v348, %v342
  %v487 = vpack.c.b16 %v349, %v343
  %v488 = vpack.c.b16 %v350, %v344
  %v489 = vpack.c.b16 %v351, %v345
  %v490 = vpack.c.b16 %v352, %v346
  %v491 = vpack.c.b16 %v353, %v347
  %v492 = vpack.c.b16 %v360, %v354
  %v493 = vpack.c.b16 %v361, %v355
  %v494 = vpack.c.b16 %v362, %v356
  %v495 = vpack.c.b16 %v363, %v357
  %v496 = vpack.c.b16 %v364, %v358
  %v497 = vpack.c.b16 %v365, %v359
  %v498 = vpack.c.b16 %v372, %v366
  %v499 = vpack.c.b16 %v373, %v367
  %v500 = vpack.c.b16 %v374, %v368
  %v501 = vpack.c.b16 %v375, %v369
  %v502 = vpack.c.b16 %v376, %v370
  %v503 = vpack.c.b16 %v377, %v371
  %v504 = vpack.c.b16 %v384, %v378
  %v505 = vpack.c.b16 %v385, %v379
  %v506 = vpack.c.b16 %v386, %v380
  %v507 = vpack.c.b16 %v387, %v381
  %v508 = vpack.c.b16 %v388, %v382
  %v509 = vpack.c.b16 %v389, %v383
  %v510 = vpack.c.b16 %v396, %v390
  %v511 = vpack.c.b16 %v397, %v391
  %v512 = vpack.c.b16 %v398, %v392
  %v513 = vpack.c.b16 %v399, %v393
  %v514 = vpack.c.b16 %v400, %v394
  %v515 = vpack.c.b16 %v401, %v395
  %v516 = vpack.c.b16 %v408, %v402
  %v517 = vpack.c.b16 %v409, %v403
  %v518 = vpack.c.b16 %v410, %v404
  %v519 = vpack.c.b16 %v411, %v405
  %v520 = vpack.c.b16 %v412, %v406
  %v521 = vpack.c.b16 %v413, %v407
  %v522 = vpack.c.b16 %v420, %v414
  %v523 = vpack.c.b16 %v421, %v415
  %v524 = vpack.c.b16 %v422, %v416
  %v525 = vpack.c.b16 %v423, %v417
  %v526 = vpack.c.b16 %v424, %v418
  %v527 = vpack.c.b16 %v425, %v419
  %v528 = vpack.c.b16 %v432, %v426
  %v529 = vpack.c.b16 %v433, %v427
  %v530 = vpack.c.b16 %v434, %v428
  %v531 = vpack.c.b16 %v435, %v429
  %v532 = vpack.c.b16 %v436, %v430
  %v533 = vpack.c.b16 %v437, %v431
  %v534 = vpack.c.b16 %v444, %v438
  %v535 = vpack.c.b16 %v445, %v439
  %v536 = vpack.c.b16 %v446, %v440
  %v537 = vpack.c.b16 %v447, %v441
  %v538 = vpack.c.b16 %v448, %v442
  %v539 = vpack.c.b16 %v449, %v443
  %v540 = vpack.c.b16 %v456, %v450
  %v541 = vpack.c.b16 %v457, %v451
  %v542 = vpack.c.b16 %v458, %v452
  %v543 = vpack.c.b16 %v459, %v453
  %v544 = vpack.c.b16 %v460, %v454
  %v545 = vpack.c.b16 %v461, %v455
  %v546 = vpack.c.b16 %v468, %v462
  %v547 = vpack.c.b16 %v469, %v463
  %v548 = vpack.c.b16 %v470, %v464
  %v549 = vpack.c.b16 %v471, %v465
  %v550 = vpack.c.b16 %v472, %v466
  %v551 = vpack.c.b16 %v473, %v467
  %vm624 = vcmask 646144
  %v625 = vsel %vm624, %v238, 0
  %vm627 = vcmask 1046528
  %vm628 = vcmask 1047552
  %v629 = vsel %vm627, 4294967295, 65535
  %v630 = vsel %vm628, %v629, 0
  %v632 = vand.u32 %v546, %v630
  %v635 = vand.u32 %v547, %v630
  %v638 = vand.u32 %v548, %v630
  %v641 = vand.u32 %v549, %v630
  %v644 = vand.u32 %v550, %v630
  %v647 = vand.u32 %v551, %v630
  %649 = vmatpush.bf16.msra.mxu0 %v516
  %650 = vmatpush.bf16.msra.mxu0 %v510
  %651 = vmatpush.bf16.msra.mxu0 %v504
  %652 = vmatpush.bf16.msra.mxu0 %v498
  %653 = vmatpush.bf16.msra.mxu0 %v492
  %654 = vmatpush.bf16.msra.mxu0 %v486
  %655 = vmatpush.bf16.msra.mxu0 %v480
  %656 = vmatpush.bf16.msra.mxu0 %v474
  %657 = vmatmul.bf16.gmra.mxu0 %v237
  %v658 = vpop.f32.mrf.mxu0
  %v659 = vadd.f32 0.0, %v658
  %v660 = vpop.f32.mrf.mxu0
  %661 = vdwg.mxu0
  %662 = vmatpush.bf16.msra.mxu0 0
  %663 = vmatpush.bf16.msra.mxu0 0
  %664 = vmatpush.bf16.msra.mxu0 0
  %665 = vmatpush.bf16.msra.mxu0 %v632
  %666 = vmatpush.bf16.msra.mxu0 %v540
  %667 = vmatpush.bf16.msra.mxu0 %v534
  %668 = vmatpush.bf16.msra.mxu0 %v528
  %669 = vmatpush.bf16.msra.mxu0 %v522
  %670 = vmatmul.bf16.gmra.mxu0 %v625
  %v671 = vpop.f32.mrf.mxu0
  %v672 = vadd.f32 %v659, %v671
  %v673 = vpop.f32.mrf.mxu0
  %674 = vdwg.mxu0
  %675 = vmatpush.bf16.msra.mxu0 %v517
  %676 = vmatpush.bf16.msra.mxu0 %v511
  %677 = vmatpush.bf16.msra.mxu0 %v505
  %678 = vmatpush.bf16.msra.mxu0 %v499
  %679 = vmatpush.bf16.msra.mxu0 %v493
  %680 = vmatpush.bf16.msra.mxu0 %v487
  %681 = vmatpush.bf16.msra.mxu0 %v481
  %682 = vmatpush.bf16.msra.mxu0 %v475
  %683 = vmatmul.bf16.gmra.mxu0 %v237
  %v684 = vpop.f32.mrf.mxu0
  %v685 = vadd.f32 0.0, %v684
  %v686 = vpop.f32.mrf.mxu0
  %687 = vdwg.mxu0
  %688 = vmatpush.bf16.msra.mxu0 0
  %689 = vmatpush.bf16.msra.mxu0 0
  %690 = vmatpush.bf16.msra.mxu0 0
  %691 = vmatpush.bf16.msra.mxu0 %v635
  %692 = vmatpush.bf16.msra.mxu0 %v541
  %693 = vmatpush.bf16.msra.mxu0 %v535
  %694 = vmatpush.bf16.msra.mxu0 %v529
  %695 = vmatpush.bf16.msra.mxu0 %v523
  %696 = vmatmul.bf16.gmra.mxu0 %v625
  %v697 = vpop.f32.mrf.mxu0
  %v698 = vadd.f32 %v685, %v697
  %v699 = vpop.f32.mrf.mxu0
  %700 = vdwg.mxu0
  %701 = vmatpush.bf16.msra.mxu0 %v518
  %702 = vmatpush.bf16.msra.mxu0 %v512
  %703 = vmatpush.bf16.msra.mxu0 %v506
  %704 = vmatpush.bf16.msra.mxu0 %v500
  %705 = vmatpush.bf16.msra.mxu0 %v494
  %706 = vmatpush.bf16.msra.mxu0 %v488
  %707 = vmatpush.bf16.msra.mxu0 %v482
  %708 = vmatpush.bf16.msra.mxu0 %v476
  %709 = vmatmul.bf16.gmra.mxu0 %v237
  %v710 = vpop.f32.mrf.mxu0
  %v711 = vadd.f32 0.0, %v710
  %v712 = vpop.f32.mrf.mxu0
  %713 = vdwg.mxu0
  %714 = vmatpush.bf16.msra.mxu0 0
  %715 = vmatpush.bf16.msra.mxu0 0
  %716 = vmatpush.bf16.msra.mxu0 0
  %717 = vmatpush.bf16.msra.mxu0 %v638
  %718 = vmatpush.bf16.msra.mxu0 %v542
  %719 = vmatpush.bf16.msra.mxu0 %v536
  %720 = vmatpush.bf16.msra.mxu0 %v530
  %721 = vmatpush.bf16.msra.mxu0 %v524
  %722 = vmatmul.bf16.gmra.mxu0 %v625
  %v723 = vpop.f32.mrf.mxu0
  %v724 = vadd.f32 %v711, %v723
  %v725 = vpop.f32.mrf.mxu0
  %726 = vdwg.mxu0
  %727 = vmatpush.bf16.msra.mxu0 %v519
  %728 = vmatpush.bf16.msra.mxu0 %v513
  %729 = vmatpush.bf16.msra.mxu0 %v507
  %730 = vmatpush.bf16.msra.mxu0 %v501
  %731 = vmatpush.bf16.msra.mxu0 %v495
  %732 = vmatpush.bf16.msra.mxu0 %v489
  %733 = vmatpush.bf16.msra.mxu0 %v483
  %734 = vmatpush.bf16.msra.mxu0 %v477
  %735 = vmatmul.bf16.gmra.mxu0 %v237
  %v736 = vpop.f32.mrf.mxu0
  %v737 = vadd.f32 0.0, %v736
  %v738 = vpop.f32.mrf.mxu0
  %739 = vdwg.mxu0
  %740 = vmatpush.bf16.msra.mxu0 0
  %741 = vmatpush.bf16.msra.mxu0 0
  %742 = vmatpush.bf16.msra.mxu0 0
  %743 = vmatpush.bf16.msra.mxu0 %v641
  %744 = vmatpush.bf16.msra.mxu0 %v543
  %745 = vmatpush.bf16.msra.mxu0 %v537
  %746 = vmatpush.bf16.msra.mxu0 %v531
  %747 = vmatpush.bf16.msra.mxu0 %v525
  %748 = vmatmul.bf16.gmra.mxu0 %v625
  %v749 = vpop.f32.mrf.mxu0
  %v750 = vadd.f32 %v737, %v749
  %v751 = vpop.f32.mrf.mxu0
  %752 = vdwg.mxu0
  %753 = vmatpush.bf16.msra.mxu0 %v520
  %754 = vmatpush.bf16.msra.mxu0 %v514
  %755 = vmatpush.bf16.msra.mxu0 %v508
  %756 = vmatpush.bf16.msra.mxu0 %v502
  %757 = vmatpush.bf16.msra.mxu0 %v496
  %758 = vmatpush.bf16.msra.mxu0 %v490
  %759 = vmatpush.bf16.msra.mxu0 %v484
  %760 = vmatpush.bf16.msra.mxu0 %v478
  %761 = vmatmul.bf16.gmra.mxu0 %v237
  %v762 = vpop.f32.mrf.mxu0
  %v763 = vadd.f32 0.0, %v762
  %v764 = vpop.f32.mrf.mxu0
  %765 = vdwg.mxu0
  %766 = vmatpush.bf16.msra.mxu0 0
  %767 = vmatpush.bf16.msra.mxu0 0
  %768 = vmatpush.bf16.msra.mxu0 0
  %769 = vmatpush.bf16.msra.mxu0 %v644
  %770 = vmatpush.bf16.msra.mxu0 %v544
  %771 = vmatpush.bf16.msra.mxu0 %v538
  %772 = vmatpush.bf16.msra.mxu0 %v532
  %773 = vmatpush.bf16.msra.mxu0 %v526
  %774 = vmatmul.bf16.gmra.mxu0 %v625
  %v775 = vpop.f32.mrf.mxu0
  %v776 = vadd.f32 %v763, %v775
  %v777 = vpop.f32.mrf.mxu0
  %778 = vdwg.mxu0
  %779 = vmatpush.bf16.msra.mxu0 %v521
  %780 = vmatpush.bf16.msra.mxu0 %v515
  %781 = vmatpush.bf16.msra.mxu0 %v509
  %782 = vmatpush.bf16.msra.mxu0 %v503
  %783 = vmatpush.bf16.msra.mxu0 %v497
  %784 = vmatpush.bf16.msra.mxu0 %v491
  %785 = vmatpush.bf16.msra.mxu0 %v485
  %786 = vmatpush.bf16.msra.mxu0 %v479
  %787 = vmatmul.bf16.gmra.mxu0 %v237
  %v788 = vpop.f32.mrf.mxu0
  %v789 = vadd.f32 0.0, %v788
  %v790 = vpop.f32.mrf.mxu0
  %791 = vdwg.mxu0
  %792 = vmatpush.bf16.msra.mxu0 0
  %793 = vmatpush.bf16.msra.mxu0 0
  %794 = vmatpush.bf16.msra.mxu0 0
  %795 = vmatpush.bf16.msra.mxu0 %v647
  %796 = vmatpush.bf16.msra.mxu0 %v545
  %797 = vmatpush.bf16.msra.mxu0 %v539
  %798 = vmatpush.bf16.msra.mxu0 %v533
  %799 = vmatpush.bf16.msra.mxu0 %v527
  %800 = vmatmul.bf16.gmra.mxu0 %v625
  %v801 = vpop.f32.mrf.mxu0
  %v802 = vadd.f32 %v789, %v801
  %v803 = vpop.f32.mrf.mxu0
  %804 = vdwg.mxu0
  %v811 = vrot.slane %v101, 6
  %v812 = vrot.slane %v114, 4
  %v813 = vrot.slane %v127, 2
  %v814 = vrot.slane %v153, 6
  %vm815 = vcmask 1041408
  %v816 = vsel %vm815, %v88, %v811
  %vm817 = vcmask 1045508
  %v818 = vsel %vm817, %v812, %v813
  %vm819 = vcmask 1043456
  %v820 = vsel %vm819, %v816, %v818
  %v821 = vsel %vm815, %v140, %v814
  %824 = vst [vmem:[%s5] sm:$0xff] %v820
  %825 = vst [vmem:[%s5 + $0x8] sm:$0xf] %v821
  %v832 = vrot.slane %v698, 6
  %v833 = vrot.slane %v724, 4
  %v834 = vrot.slane %v750, 2
  %v835 = vrot.slane %v802, 6
  %v836 = vsel %vm815, %v672, %v832
  %v837 = vsel %vm817, %v833, %v834
  %v838 = vsel %vm819, %v836, %v837
  %v839 = vsel %vm815, %v776, %v835
  %842 = vst [vmem:[%s6] sm:$0xff] %v838
  %843 = vst [vmem:[%s6 + $0x8] sm:$0xf] %v839
  %v844 = vld [vmem:[%s4] sm:$0x3f]
  %v846 = vperm.slane %v844, 0
  %v847 = vperm.slane %v844, 1
  %v848 = vperm.slane %v844, 2
  %v849 = vperm.slane %v844, 3
  %v850 = vperm.slane %v844, 4
  %v851 = vperm.slane %v844, 5
  %v858 = vadd.f32 %v846, %v88
  %v859 = vadd.f32 %v847, %v101
  %v860 = vadd.f32 %v848, %v114
  %v861 = vadd.f32 %v849, %v127
  %v862 = vadd.f32 %v850, %v140
  %v863 = vadd.f32 %v851, %v153
  %v864 = vadd.f32 %v858, %v672
  %v865 = vadd.f32 %v859, %v698
  %v866 = vadd.f32 %v860, %v724
  %v867 = vadd.f32 %v861, %v750
  %v868 = vadd.f32 %v862, %v776
  %v869 = vadd.f32 %v863, %v802
  %v876 = vrot.slane %v865, 6
  %v877 = vrot.slane %v866, 4
  %v878 = vrot.slane %v867, 2
  %v879 = vrot.slane %v869, 6
  %v880 = vsel %vm815, %v864, %v876
  %v881 = vsel %vm817, %v877, %v878
  %v882 = vsel %vm819, %v880, %v881
  %v883 = vsel %vm815, %v868, %v879
  %886 = vst [vmem:[%s7] sm:$0xff] %v882
  %887 = vst [vmem:[%s7 + $0x8] sm:$0xf] %v883
  // Predicated region
  $region22: #{smpl_forward_pallas.2} parent=0 // pred_check
    _
  $region23: #{smpl_forward_pallas.2} parent=0 // pred_check_branch
    %889 = sbr.rel (0) target = $region25
  $region24: #{smpl_forward_pallas.2} parent=0 // pred_region
    _
  $region25: #{smpl_forward_pallas.2} parent=0 // pred_fallthru
    _
  // Predicated region
  $region26: #{smpl_forward_pallas.2} parent=0 // pred_check
    _
  $region27: #{smpl_forward_pallas.2} parent=0 // pred_check_branch
    %891 = sbr.rel (0) target = $region29
  $region28: #{smpl_forward_pallas.2} parent=0 // pred_region
    _
  $region29: #{smpl_forward_pallas.2} parent=0 // pred_fallthru
    _
  // Predicated region
  $region30: #{smpl_forward_pallas.2} parent=0 // pred_check
    _
  $region31: #{smpl_forward_pallas.2} parent=0 // pred_check_branch
    %893 = sbr.rel (0) target = $region33
  $region32: #{smpl_forward_pallas.2} parent=0 // pred_region
    _
  $region33: #{smpl_forward_pallas.2} parent=0 // pred_fallthru
    _
  // Predicated region
  $region34: #{smpl_forward_pallas.2} parent=0 // pred_check
    _
  $region35: #{smpl_forward_pallas.2} parent=0 // pred_check_branch
    %895 = sbr.rel (0) target = $region37
  $region36: #{smpl_forward_pallas.2} parent=0 // pred_region
    _
  $region37: #{smpl_forward_pallas.2} parent=0 // pred_fallthru
    _
  // Predicated region
  $region38: #{smpl_forward_pallas.2} parent=0 // pred_check
    _
  $region39: #{smpl_forward_pallas.2} parent=0 // pred_check_branch
    %897 = sbr.rel (0) target = $region41
  $region40: #{smpl_forward_pallas.2} parent=0 // pred_region
    _
  $region41: #{smpl_forward_pallas.2} parent=0 // pred_fallthru
    _
  // Predicated region
  $region42: #{smpl_forward_pallas.2} parent=0 // pred_check
    _
  $region43: #{smpl_forward_pallas.2} parent=0 // pred_check_branch
    %899 = sbr.rel (0) target = $region45
  $region44: #{smpl_forward_pallas.2} parent=0 // pred_region
    _
  $region45: #{smpl_forward_pallas.2} parent=0 // pred_fallthru
    _

// kernel: smpl_forward_pallas.3
$region0: #{smpl_forward_pallas.3}
  #allocation0 [shape = 'u32[]', space=smem, size = 0x4, offset = 0x4, fixed_abs, tag = 'smem constant byte address 0x4 - core index']
  #allocation1 [shape = 'u32[72,128]{1,0:T(1,128)}', space=vmem, size = 0x9000, scoped, tag = 'internal scratch']
  %s0 = inlined_call_operand.vmem [shape: bf16[32,24], index: 0, kind: input, shape index: {}]
  %s1 = inlined_call_operand.vmem [shape: bf16[24,256], index: 1, kind: input, shape index: {}]
  %s2 = inlined_call_operand.vmem [shape: f32[6,256], index: 2, kind: input, shape index: {}]
  %s3 = inlined_call_operand.vmem [shape: f32[32,256], index: 3, kind: output, shape index: {0}]
  %s4 = inlined_call_operand.vmem [shape: f32[6,256], index: 4, kind: output, shape index: {1}]
  %5 = xla_tuple %s3, %s4
  %s6 = sld [smem:[#allocation0]]
  $region30: #{smpl_forward_pallas.3} parent=0
    _
  %s8 = ssub.s32 1, %s6
  %s9 = scalar_select 0, %s8, %s6
  // Predicated region
  $region2: #{smpl_forward_pallas.3} parent=0 // pred_check
    _
  $region3: #{smpl_forward_pallas.3} parent=0 // pred_check_branch
    %11 = sbr.rel (0) target = $region5
  $region4: #{smpl_forward_pallas.3} parent=0 // pred_region
    _
  $region5: #{smpl_forward_pallas.3} parent=0 // pred_fallthru
    _
  // Predicated region
  $region6: #{smpl_forward_pallas.3} parent=0 // pred_check
    _
  $region7: #{smpl_forward_pallas.3} parent=0 // pred_check_branch
    %13 = sbr.rel (0) target = $region9
  $region8: #{smpl_forward_pallas.3} parent=0 // pred_region
    _
  $region9: #{smpl_forward_pallas.3} parent=0 // pred_fallthru
    _
  // Predicated region
  $region10: #{smpl_forward_pallas.3} parent=0 // pred_check
    _
  $region11: #{smpl_forward_pallas.3} parent=0 // pred_check_branch
    %15 = sbr.rel (0) target = $region13
  $region12: #{smpl_forward_pallas.3} parent=0 // pred_region
    _
  $region13: #{smpl_forward_pallas.3} parent=0 // pred_fallthru
    _
  %v17 = vld [vmem:[%s0] sm:$0xf]
  %v18 = vld [vmem:[%s0 + $0x4] sm:$0xf]
  %v19 = vld [vmem:[%s0 + $0x8] sm:$0xf]
  %v20 = vld [vmem:[%s0 + $0xc] sm:$0xf]
  %v21 = vld [vmem:[%s1] sm:$0xff]
  %v22 = vld [vmem:[%s1 + $0x8] sm:$0xff]
  %v23 = vld [vmem:[%s1 + $0x10] sm:$0xff]
  %v28 = vunpack.c.l.b16 %v17
  %v29 = vunpack.c.l.b16 %v18
  %v30 = vunpack.c.l.b16 %v19
  %v31 = vunpack.c.l.b16 %v20
  %v32 = vpack.c.b16 %v29, %v28
  %v33 = vpack.c.b16 %v31, %v30
  %v37 = vunpack.c.l.b16 %v21
  %v38 = vunpack.c.h.b16 %v21
  %v39 = vunpack.c.l.b16 %v22
  %v40 = vunpack.c.h.b16 %v22
  %v41 = vunpack.c.l.b16 %v23
  %v42 = vunpack.c.h.b16 %v23
  %v43 = vpack.c.b16 %v39, %v37
  %v44 = vpack.c.b16 %v40, %v38
  %v45 = vpack.c.b16 %v41, %v41
  %v46 = vpack.c.b16 %v42, %v42
  %vm49 = vcmask 195584
  %v51 = vsel %vm49, %v32, 0
  %v54 = vsel %vm49, %v33, 0
  %vm56 = vcmask 1043456
  %v58 = vsel %vm56, %v45, 0
  %v61 = vsel %vm56, %v46, 0
  %63 = vmatpush.bf16.msra.mxu0 0
  %64 = vmatpush.bf16.msra.mxu0 0
  %65 = vmatpush.bf16.msra.mxu0 0
  %66 = vmatpush.bf16.msra.mxu0 0
  %67 = vmatpush.bf16.msra.mxu0 0
  %68 = vmatpush.bf16.msra.mxu0 0
  %69 = vmatpush.bf16.msra.mxu0 %v58
  %70 = vmatpush.bf16.msra.mxu0 %v43
  %71 = vmatmul.bf16.gmra.mxu0 %v51
  %v72 = vpop.f32.mrf.mxu0
  %v73 = vadd.f32 0.0, %v72
  %v74 = vpop.f32.mrf.mxu0
  %v75 = vadd.f32 0.0, %v74
  %76 = vmatmul.bf16.gmra.mxu0 %v54
  %v77 = vpop.f32.mrf.mxu0
  %v78 = vadd.f32 0.0, %v77
  %v79 = vpop.f32.mrf.mxu0
  %v80 = vadd.f32 0.0, %v79
  %81 = vdwg.mxu0
  %82 = vmatpush.bf16.msra.mxu0 0
  %83 = vmatpush.bf16.msra.mxu0 0
  %84 = vmatpush.bf16.msra.mxu0 0
  %85 = vmatpush.bf16.msra.mxu0 0
  %86 = vmatpush.bf16.msra.mxu0 0
  %87 = vmatpush.bf16.msra.mxu0 0
  %88 = vmatpush.bf16.msra.mxu0 %v61
  %89 = vmatpush.bf16.msra.mxu0 %v44
  %90 = vmatmul.bf16.gmra.mxu0 %v51
  %v91 = vpop.f32.mrf.mxu0
  %v92 = vadd.f32 0.0, %v91
  %v93 = vpop.f32.mrf.mxu0
  %v94 = vadd.f32 0.0, %v93
  %95 = vmatmul.bf16.gmra.mxu0 %v54
  %v96 = vpop.f32.mrf.mxu0
  %v97 = vadd.f32 0.0, %v96
  %v98 = vpop.f32.mrf.mxu0
  %v99 = vadd.f32 0.0, %v98
  %100 = vdwg.mxu0
  %101 = vst [vmem:[%s3] sm:$0xff] %v73
  %102 = vst [vmem:[%s3 + $0x8] sm:$0xff] %v92
  %103 = vst [vmem:[%s3 + $0x10] sm:$0xff] %v75
  %104 = vst [vmem:[%s3 + $0x18] sm:$0xff] %v94
  %105 = vst [vmem:[%s3 + $0x20] sm:$0xff] %v78
  %106 = vst [vmem:[%s3 + $0x28] sm:$0xff] %v97
  %107 = vst [vmem:[%s3 + $0x30] sm:$0xff] %v80
  %108 = vst [vmem:[%s3 + $0x38] sm:$0xff] %v99
  %v109 = vld [vmem:[%s2] sm:$0x3f]
  %v110 = vld [vmem:[%s2 + $0x8] sm:$0x3f]
  %v111 = vmul.f32 %v73, %v109
  %v112 = vmul.f32 %v92, %v110
  %v115 = vrot.slane %v111, 5
  %v116 = vrot.slane %v112, 5
  %v119 = vadd.f32 %v73, %v115
  %v120 = vadd.f32 %v92, %v116
  %v121 = vrot.slane %v111, 6
  %v122 = vrot.slane %v112, 6
  %v125 = vadd.f32 %v119, %v121
  %v126 = vadd.f32 %v120, %v122
  %v127 = vrot.slane %v111, 7
  %v128 = vrot.slane %v112, 7
  %v131 = vadd.f32 %v125, %v127
  %v132 = vadd.f32 %v126, %v128
  %135 = vst [vmem:[#allocation1] sm:$0xff] %v131
  %136 = vst [vmem:[#allocation1 + $0x9] sm:$0xff] %v132
  %s137 = scalar_lea.vmem [#allocation1], 3
  %v138 = vld [vmem:[%s137] ss:$9 sm:$0xff]
  %v140 = vlaneseq
  %vm141 = vcmp.ge.s32.totalorder %v140, 0
  %vm142 = vcmp.lt.s32.totalorder %v140, 256
  %vm143 = vmand %vm141, %vm142
  %144 = vst.msk [vmem:[%s4] ss:$8 sm:$0x3] %vm143, %v138
  %145 = vst.msk [vmem:[%s4] ss:$8 sm:$0x0] %vm143, %v138
  %v148 = vrot.slane %v109, 4
  %v149 = vrot.slane %v110, 4
  %v152 = vmul.f32 %v73, %v148
  %v153 = vmul.f32 %v92, %v149
  %v156 = vrot.slane %v152, 5
  %v157 = vrot.slane %v153, 5
  %v160 = vadd.f32 %v73, %v156
  %v161 = vadd.f32 %v92, %v157
  %v162 = vrot.slane %v152, 6
  %v163 = vrot.slane %v153, 6
  %v166 = vadd.f32 %v160, %v162
  %v167 = vadd.f32 %v161, %v163
  %v168 = vrot.slane %v152, 7
  %v169 = vrot.slane %v153, 7
  %v172 = vadd.f32 %v166, %v168
  %v173 = vadd.f32 %v167, %v169
  %176 = vst [vmem:[#allocation1] sm:$0xff] %v172
  %177 = vst [vmem:[#allocation1 + $0x9] sm:$0xff] %v173
  %s178 = scalar_lea.vmem [#allocation1], 7
  %v179 = vld [vmem:[%s178] ss:$9 sm:$0xff]
  %s181 = scalar_lea.vmem %s4, 1
  %182 = vst.msk [vmem:[%s181] ss:$8 sm:$0x3] %vm143, %v179
  %183 = vst.msk [vmem:[%s181] ss:$8 sm:$0x0] %vm143, %v179
  %v184 = vmul.f32 %v75, %v109
  %v185 = vmul.f32 %v94, %v110
  %v188 = vrot.slane %v184, 5
  %v189 = vrot.slane %v185, 5
  %v192 = vadd.f32 %v75, %v188
  %v193 = vadd.f32 %v94, %v189
  %v194 = vrot.slane %v184, 6
  %v195 = vrot.slane %v185, 6
  %v198 = vadd.f32 %v192, %v194
  %v199 = vadd.f32 %v193, %v195
  %v200 = vrot.slane %v184, 7
  %v201 = vrot.slane %v185, 7
  %v204 = vadd.f32 %v198, %v200
  %v205 = vadd.f32 %v199, %v201
  %208 = vst [vmem:[#allocation1] sm:$0xff] %v204
  %209 = vst [vmem:[#allocation1 + $0x9] sm:$0xff] %v205
  %s210 = scalar_lea.vmem [#allocation1], 3
  %v211 = vld [vmem:[%s210] ss:$9 sm:$0xff]
  %s213 = scalar_lea.vmem %s4, 2
  %214 = vst.msk [vmem:[%s213] ss:$8 sm:$0x3] %vm143, %v211
  %215 = vst.msk [vmem:[%s213] ss:$8 sm:$0x0] %vm143, %v211
  %v216 = vrot.slane %v109, 3
  %v217 = vrot.slane %v110, 3
  %v220 = vmul.f32 %v78, %v216
  %v221 = vmul.f32 %v97, %v217
  %v224 = vrot.slane %v220, 5
  %v225 = vrot.slane %v221, 5
  %v228 = vadd.f32 %v78, %v224
  %v229 = vadd.f32 %v97, %v225
  %v230 = vrot.slane %v220, 6
  %v231 = vrot.slane %v221, 6
  %v234 = vadd.f32 %v228, %v230
  %v235 = vadd.f32 %v229, %v231
  %v236 = vrot.slane %v220, 7
  %v237 = vrot.slane %v221, 7
  %v240 = vadd.f32 %v234, %v236
  %v241 = vadd.f32 %v235, %v237
  %244 = vst [vmem:[#allocation1] sm:$0xff] %v240
  %245 = vst [vmem:[#allocation1 + $0x9] sm:$0xff] %v241
  %s246 = scalar_lea.vmem [#allocation1], 3
  %v247 = vld [vmem:[%s246] ss:$9 sm:$0xff]
  %s249 = scalar_lea.vmem %s4, 3
  %250 = vst.msk [vmem:[%s249] ss:$8 sm:$0x3] %vm143, %v247
  %251 = vst.msk [vmem:[%s249] ss:$8 sm:$0x0] %vm143, %v247
  %v252 = vrot.slane %v109, 7
  %v253 = vrot.slane %v110, 7
  %v256 = vmul.f32 %v78, %v252
  %v257 = vmul.f32 %v97, %v253
  %v260 = vrot.slane %v256, 5
  %v261 = vrot.slane %v257, 5
  %v264 = vadd.f32 %v78, %v260
  %v265 = vadd.f32 %v97, %v261
  %v266 = vrot.slane %v256, 6
  %v267 = vrot.slane %v257, 6
  %v270 = vadd.f32 %v264, %v266
  %v271 = vadd.f32 %v265, %v267
  %v272 = vrot.slane %v256, 7
  %v273 = vrot.slane %v257, 7
  %v276 = vadd.f32 %v270, %v272
  %v277 = vadd.f32 %v271, %v273
  %280 = vst [vmem:[#allocation1] sm:$0xff] %v276
  %281 = vst [vmem:[#allocation1 + $0x9] sm:$0xff] %v277
  %s282 = scalar_lea.vmem [#allocation1], 7
  %v283 = vld [vmem:[%s282] ss:$9 sm:$0xff]
  %s285 = scalar_lea.vmem %s4, 4
  %286 = vst.msk [vmem:[%s285] ss:$8 sm:$0x3] %vm143, %v283
  %287 = vst.msk [vmem:[%s285] ss:$8 sm:$0x0] %vm143, %v283
  %v288 = vmul.f32 %v80, %v216
  %v289 = vmul.f32 %v99, %v217
  %v292 = vrot.slane %v288, 5
  %v293 = vrot.slane %v289, 5
  %v296 = vadd.f32 %v80, %v292
  %v297 = vadd.f32 %v99, %v293
  %v298 = vrot.slane %v288, 6
  %v299 = vrot.slane %v289, 6
  %v302 = vadd.f32 %v296, %v298
  %v303 = vadd.f32 %v297, %v299
  %v304 = vrot.slane %v288, 7
  %v305 = vrot.slane %v289, 7
  %v308 = vadd.f32 %v302, %v304
  %v309 = vadd.f32 %v303, %v305
  %312 = vst [vmem:[#allocation1] sm:$0xff] %v308
  %313 = vst [vmem:[#allocation1 + $0x9] sm:$0xff] %v309
  %s314 = scalar_lea.vmem [#allocation1], 3
  %v315 = vld [vmem:[%s314] ss:$9 sm:$0xff]
  %s317 = scalar_lea.vmem %s4, 5
  %318 = vst.msk [vmem:[%s317] ss:$8 sm:$0x3] %vm143, %v315
  %319 = vst.msk [vmem:[%s317] ss:$8 sm:$0x0] %vm143, %v315
  // Predicated region
  $region14: #{smpl_forward_pallas.3} parent=0 // pred_check
    _
  $region15: #{smpl_forward_pallas.3} parent=0 // pred_check_branch
    %321 = sbr.rel (0) target = $region17
  $region16: #{smpl_forward_pallas.3} parent=0 // pred_region
    _
  $region17: #{smpl_forward_pallas.3} parent=0 // pred_fallthru
    _
  // Predicated region
  $region18: #{smpl_forward_pallas.3} parent=0 // pred_check
    _
  $region19: #{smpl_forward_pallas.3} parent=0 // pred_check_branch
    %323 = sbr.rel (0) target = $region21
  $region20: #{smpl_forward_pallas.3} parent=0 // pred_region
    _
  $region21: #{smpl_forward_pallas.3} parent=0 // pred_fallthru
    _
  // Predicated region
  $region22: #{smpl_forward_pallas.3} parent=0 // pred_check
    _
  $region23: #{smpl_forward_pallas.3} parent=0 // pred_check_branch
    %325 = sbr.rel (0) target = $region25
  $region24: #{smpl_forward_pallas.3} parent=0 // pred_region
    _
  $region25: #{smpl_forward_pallas.3} parent=0 // pred_fallthru
    _
  // Predicated region
  $region26: #{smpl_forward_pallas.3} parent=0 // pred_check
    _
  $region27: #{smpl_forward_pallas.3} parent=0 // pred_check_branch
    %327 = sbr.rel (0) target = $region29
  $region28: #{smpl_forward_pallas.3} parent=0 // pred_region
    _
  $region29: #{smpl_forward_pallas.3} parent=0 // pred_fallthru
    _

</llo_original>
